<compile_context>
chip_gen: v7x
topology: tpu7x:2x2x1
jax: 0.10.0
libtpu: 0.0.40
codegen_flags: <defaults>
</compile_context>

<pallas_src>
import functools

import jax
import jax.numpy as jnp
from jax.experimental import pallas as pl
from jax.experimental.pallas import tpu as pltpu

EPS = 1e-5   # BatchNorm2d default eps
LANE = 128


def _round_up(x, m):
    return (x + m - 1) // m * m


def fused_conv_bn_silu_kernel(patches_ref, w_ref, b_ref, gamma_ref, beta_ref,
                              o_ref, *, p_true, need_mask, inv_p):
    """Fused conv-as-GEMM (bf16 operands, f32 accum) + BatchNorm + SiLU."""
    # Conv GEMM on the MXU with f32 accumulation, then bias.
    conv = jnp.dot(patches_ref[...], w_ref[...],
                   preferred_element_type=jnp.float32)        # (P_pad, C_pad)
    conv = conv + b_ref[...]

    # Batch statistics over the TRUE P rows only (padded rows carry bias).
    if need_mask:
        row = jax.lax.broadcasted_iota(jnp.int32, (conv.shape[0], 1), 0)
        valid = row < p_true
        conv_m = jnp.where(valid, conv, 0.0)
    else:
        conv_m = conv
    mean = jnp.sum(conv_m, axis=0, keepdims=True) * inv_p      # (1, C_pad)
    diff = conv - mean
    if need_mask:
        diff = jnp.where(valid, diff, 0.0)
    var = jnp.sum(diff * diff, axis=0, keepdims=True) * inv_p  # biased variance

    # Fold BN into a single scale/shift FMA pass.
    scale = gamma_ref[...] * jax.lax.rsqrt(var + EPS)
    shift = beta_ref[...] - mean * scale
    v2 = conv * scale + shift

    # SiLU: sigmoid via tanh (single EUP push; exp+recip would take two).
    sig = 0.5 * (jnp.tanh(0.5 * v2) + 1.0)
    o_ref[...] = v2 * sig


def im2col_nchw(x, kh, kw, stride, pad, dtype=jnp.bfloat16):
    """Extract conv patches from NCHW input -> (N*OH*OW, Cin*KH*KW)."""
    n, c, h, w = x.shape
    xp = jnp.pad(x.astype(dtype), ((0, 0), (0, 0), (pad, pad), (pad, pad)))
    oh = (h + 2 * pad - kh) // stride + 1
    ow = (w + 2 * pad - kw) // stride + 1
    cols = []
    for i in range(kh):
        for j in range(kw):
            sl = xp[:, :, i:i + stride * (oh - 1) + 1:stride,
                          j:j + stride * (ow - 1) + 1:stride]   # (N,Cin,OH,OW)
            cols.append(sl)
    patches = jnp.stack(cols, axis=0)                            # (KH*KW,N,Cin,OH,OW)
    patches = jnp.transpose(patches, (1, 3, 4, 2, 0))            # (N,OH,OW,Cin,KH*KW)
    return patches.reshape(n * oh * ow, c * kh * kw), oh, ow


def model_forward(x, weight, bias, gamma, beta, *, stride=2, pad=1):
    """x: (N,Cin,H,W); weight: (Cout,Cin,KH,KW) (PyTorch layout)."""
    n, cin, h, w = x.shape
    cout, _, kh, kw = weight.shape

    patches, oh, ow = im2col_nchw(x, kh, kw, stride, pad)        # (P, K) bf16
    p_true, k_true = patches.shape

    # Pad K and Cout to lane-dense multiples of 128; pad P to sublane multiple.
    k_pad = _round_up(k_true, LANE)
    c_pad = _round_up(cout, LANE)
    p_pad = _round_up(p_true, 8)
    need_mask = p_pad != p_true

    patches_p = jnp.zeros((p_pad, k_pad), jnp.bfloat16)
    patches_p = patches_p.at[:p_true, :k_true].set(patches)

    w_mat = weight.reshape(cout, cin * kh * kw).T                # (K, Cout)
    w_p = jnp.zeros((k_pad, c_pad), jnp.bfloat16)
    w_p = w_p.at[:k_true, :cout].set(w_mat.astype(jnp.bfloat16))

    b_p = jnp.zeros((1, c_pad), jnp.float32).at[:, :cout].set(bias.reshape(1, cout))
    g_p = jnp.zeros((1, c_pad), jnp.float32).at[:, :cout].set(gamma.reshape(1, cout))
    be_p = jnp.zeros((1, c_pad), jnp.float32).at[:, :cout].set(beta.reshape(1, cout))

    # Entire working set (~0.5 MiB) is VMEM-resident: one fused grid step.
    out_pad = pl.pallas_call(
        functools.partial(fused_conv_bn_silu_kernel, p_true=p_true,
                          need_mask=need_mask, inv_p=1.0 / p_true),
        grid=(1,),
        in_specs=[
            pl.BlockSpec((p_pad, k_pad), lambda i: (0, 0)),      # patches
            pl.BlockSpec((k_pad, c_pad), lambda i: (0, 0)),      # weight
            pl.BlockSpec((1, c_pad), lambda i: (0, 0)),          # bias
            pl.BlockSpec((1, c_pad), lambda i: (0, 0)),          # gamma
            pl.BlockSpec((1, c_pad), lambda i: (0, 0)),          # beta
        ],
        out_specs=pl.BlockSpec((p_pad, c_pad), lambda i: (0, 0)),
        out_shape=jax.ShapeDtypeStruct((p_pad, c_pad), jnp.float32),
        compiler_params=pltpu.CompilerParams(
            dimension_semantics=("arbitrary",),
            vmem_limit_bytes=32 * 1024 * 1024),
    )(patches_p, w_p, b_p, g_p, be_p)

    # Strip padding: (P, Cout) -> (N, OH, OW, Cout) -> NCHW
    out = out_pad[:p_true, :cout].reshape(n, oh, ow, cout)
    return jnp.transpose(out, (0, 3, 1, 2))


def reference_forward(x, weight, bias, gamma, beta, *, stride=2, pad=1):
    conv = jax.lax.conv_general_dilated(
        x, weight, window_strides=(stride, stride),
        padding=((pad, pad), (pad, pad)),
        dimension_numbers=("NCHW", "OIHW", "NCHW"))
    conv = conv + bias.reshape(1, -1, 1, 1)
    mean = jnp.mean(conv, axis=(0, 2, 3), keepdims=True)
    var = jnp.mean((conv - mean) ** 2, axis=(0, 2, 3), keepdims=True)
    v2 = (conv - mean) * jax.lax.rsqrt(var + EPS)
    v2 = v2 * gamma.reshape(1, -1, 1, 1) + beta.reshape(1, -1, 1, 1)
    return v2 * jax.nn.sigmoid(v2)


if __name__ == "__main__":
    # Small shapes consistent with Conv2d(3, 16, 5, stride=2, padding=1).
    N, CIN, H, W = 2, 3, 32, 32
    COUT, KH, KW = 16, 5, 5

    key = jax.random.PRNGKey(0)
    kx, kw_, kb = jax.random.split(key, 3)
    x = jax.random.normal(kx, (N, CIN, H, W), dtype=jnp.float32)
    weight = jax.random.normal(kw_, (COUT, CIN, KH, KW), dtype=jnp.float32) * 0.1
    bias = jax.random.normal(kb, (COUT,), dtype=jnp.float32) * 0.1
    gamma = jnp.ones((COUT,), dtype=jnp.float32)   # BatchNorm2d weight init
    beta = jnp.zeros((COUT,), dtype=jnp.float32)   # BatchNorm2d bias init

    out = model_forward(x, weight, bias, gamma, beta)
    out = jax.block_until_ready(out)

    ref = reference_forward(x, weight, bias, gamma, beta)
    assert out.shape == ref.shape, (out.shape, ref.shape)
    # bf16 matmul operands (f32 accumulation) => bf16-level tolerance.
    assert jnp.allclose(out, ref, rtol=2e-2, atol=2e-2), "mismatch vs reference"

    print("KERNEL_OK")
</pallas_src>

<mosaic_0001>
module attributes {stable_mosaic.version = 11 : i64} {
  func.func @fused_conv_bn_silu_kernel(%arg0: i32, %arg1: memref<456x128xbf16, #tpu.memory_space<vmem>>, %arg2: memref<128x128xbf16, #tpu.memory_space<vmem>>, %arg3: memref<1x128xf32, #tpu.memory_space<vmem>>, %arg4: memref<1x128xf32, #tpu.memory_space<vmem>>, %arg5: memref<1x128xf32, #tpu.memory_space<vmem>>, %arg6: memref<456x128xf32, #tpu.memory_space<vmem>>) attributes {dimension_semantics = [#tpu.dimension_semantics<arbitrary>], iteration_bounds = array<i64: 1>, scalar_prefetch = 0 : i64, scratch_operands = 0 : i64, tpu.core_type = #tpu.core_type<tc>, window_params = [{pipeline_mode = #tpu.pipeline_mode<synchronous>, transform_indices = @transform_0, window_bounds = array<i64: 456, 128>}, {pipeline_mode = #tpu.pipeline_mode<synchronous>, transform_indices = @transform_1, window_bounds = array<i64: 128, 128>}, {pipeline_mode = #tpu.pipeline_mode<synchronous>, transform_indices = @transform_2, window_bounds = array<i64: 1, 128>}, {pipeline_mode = #tpu.pipeline_mode<synchronous>, transform_indices = @transform_3, window_bounds = array<i64: 1, 128>}, {pipeline_mode = #tpu.pipeline_mode<synchronous>, transform_indices = @transform_4, window_bounds = array<i64: 1, 128>}, {pipeline_mode = #tpu.pipeline_mode<synchronous>, transform_indices = @transform_5, window_bounds = array<i64: 456, 128>}]} {
    %c0 = arith.constant 0 : index
    %c0_0 = arith.constant 0 : index
    %0 = vector.load %arg1[%c0, %c0_0] : memref<456x128xbf16, #tpu.memory_space<vmem>>, vector<456x128xbf16>
    %c0_1 = arith.constant 0 : index
    %c0_2 = arith.constant 0 : index
    %1 = vector.load %arg2[%c0_1, %c0_2] : memref<128x128xbf16, #tpu.memory_space<vmem>>, vector<128x128xbf16>
    %cst = arith.constant dense<0.000000e+00> : vector<456x128xf32>
    %2 = tpu.matmul %0, %1, %cst {dimension_numbers = #tpu.dot_dimension_numbers<[1], [0], [0], [1], [0, 0, 1, 1], [], []>} : vector<456x128xbf16>, vector<128x128xbf16>, vector<456x128xf32> -> vector<456x128xf32>
    %c0_3 = arith.constant 0 : index
    %c0_4 = arith.constant 0 : index
    %3 = vector.load %arg3[%c0_3, %c0_4] : memref<1x128xf32, #tpu.memory_space<vmem>>, vector<1x128xf32>
    %4 = vector.broadcast %3 : vector<1x128xf32> to vector<456x128xf32>
    %5 = arith.addf %2, %4 : vector<456x128xf32>
    %6 = tpu.iota {dimensions = array<i32: 0>} : vector<456x1xi32>
    %c450_i32 = arith.constant 450 : i32
    %7 = vector.broadcast %c450_i32 : i32 to vector<456x1xi32>
    %8 = arith.cmpi slt, %6, %7 : vector<456x1xi32>
    %cst_5 = arith.constant 0.000000e+00 : f32
    %9 = vector.shape_cast %8 : vector<456x1xi1> to vector<456x1xi1>
    %10 = vector.broadcast %9 : vector<456x1xi1> to vector<456x128xi1>
    %11 = vector.broadcast %cst_5 : f32 to vector<456x128xf32>
    %12 = arith.select %10, %5, %11 : vector<456x128xi1>, vector<456x128xf32>
    %cst_6 = arith.constant dense<0.000000e+00> : vector<128xf32>
    %13 = vector.multi_reduction <add>, %12, %cst_6 [0] : vector<456x128xf32> to vector<128xf32>
    %14 = vector.shape_cast %13 : vector<128xf32> to vector<1x128xf32>
    %cst_7 = arith.constant 0.00222222228 : f32
    %15 = vector.broadcast %cst_7 : f32 to vector<1x128xf32>
    %16 = arith.mulf %14, %15 : vector<1x128xf32>
    %17 = vector.broadcast %16 : vector<1x128xf32> to vector<456x128xf32>
    %18 = arith.subf %5, %17 : vector<456x128xf32>
    %cst_8 = arith.constant 0.000000e+00 : f32
    %19 = vector.shape_cast %8 : vector<456x1xi1> to vector<456x1xi1>
    %20 = vector.broadcast %19 : vector<456x1xi1> to vector<456x128xi1>
    %21 = vector.broadcast %cst_8 : f32 to vector<456x128xf32>
    %22 = arith.select %20, %18, %21 : vector<456x128xi1>, vector<456x128xf32>
    %23 = arith.mulf %22, %22 : vector<456x128xf32>
    %cst_9 = arith.constant dense<0.000000e+00> : vector<128xf32>
    %24 = vector.multi_reduction <add>, %23, %cst_9 [0] : vector<456x128xf32> to vector<128xf32>
    %25 = vector.shape_cast %24 : vector<128xf32> to vector<1x128xf32>
    %cst_10 = arith.constant 0.00222222228 : f32
    %26 = vector.broadcast %cst_10 : f32 to vector<1x128xf32>
    %27 = arith.mulf %25, %26 : vector<1x128xf32>
    %c0_11 = arith.constant 0 : index
    %c0_12 = arith.constant 0 : index
    %28 = vector.load %arg4[%c0_11, %c0_12] : memref<1x128xf32, #tpu.memory_space<vmem>>, vector<1x128xf32>
    %cst_13 = arith.constant 9.99999974E-6 : f32
    %29 = vector.broadcast %cst_13 : f32 to vector<1x128xf32>
    %30 = arith.addf %27, %29 : vector<1x128xf32>
    %31 = math.rsqrt %30 : vector<1x128xf32>
    %32 = arith.mulf %28, %31 : vector<1x128xf32>
    %c0_14 = arith.constant 0 : index
    %c0_15 = arith.constant 0 : index
    %33 = vector.load %arg5[%c0_14, %c0_15] : memref<1x128xf32, #tpu.memory_space<vmem>>, vector<1x128xf32>
    %34 = arith.mulf %16, %32 : vector<1x128xf32>
    %35 = arith.subf %33, %34 : vector<1x128xf32>
    %36 = vector.broadcast %32 : vector<1x128xf32> to vector<456x128xf32>
    %37 = arith.mulf %5, %36 : vector<456x128xf32>
    %38 = vector.broadcast %35 : vector<1x128xf32> to vector<456x128xf32>
    %39 = arith.addf %37, %38 : vector<456x128xf32>
    %cst_16 = arith.constant 5.000000e-01 : f32
    %40 = vector.broadcast %cst_16 : f32 to vector<456x128xf32>
    %41 = arith.mulf %40, %39 : vector<456x128xf32>
    %42 = math.tanh %41 : vector<456x128xf32>
    %cst_17 = arith.constant 1.000000e+00 : f32
    %43 = vector.broadcast %cst_17 : f32 to vector<456x128xf32>
    %44 = arith.addf %42, %43 : vector<456x128xf32>
    %cst_18 = arith.constant 5.000000e-01 : f32
    %45 = vector.broadcast %cst_18 : f32 to vector<456x128xf32>
    %46 = arith.mulf %45, %44 : vector<456x128xf32>
    %47 = arith.mulf %39, %46 : vector<456x128xf32>
    %c0_19 = arith.constant 0 : index
    %c0_20 = arith.constant 0 : index
    %48 = vector.load %arg6[%c0_19, %c0_20] : memref<456x128xf32, #tpu.memory_space<vmem>>, vector<456x128xf32>
    tpu.vector_store %arg6[%c0_19, %c0_20], %47 {strides = array<i32>} : memref<456x128xf32, #tpu.memory_space<vmem>>, vector<456x128xf32>,
    return
  }
  func.func @transform_0(%arg0: i32) -> (i32, i32) {
    %c0_i32 = arith.constant 0 : i32
    %c0_i32_0 = arith.constant 0 : i32
    %c0_i32_1 = arith.constant 0 : i32
    return %c0_i32, %c0_i32_0 : i32, i32
  }
  func.func @transform_1(%arg0: i32) -> (i32, i32) {
    %c0_i32 = arith.constant 0 : i32
    %c0_i32_0 = arith.constant 0 : i32
    %c0_i32_1 = arith.constant 0 : i32
    return %c0_i32, %c0_i32_0 : i32, i32
  }
  func.func @transform_2(%arg0: i32) -> (i32, i32) {
    %c0_i32 = arith.constant 0 : i32
    %c0_i32_0 = arith.constant 0 : i32
    %c0_i32_1 = arith.constant 0 : i32
    return %c0_i32, %c0_i32_0 : i32, i32
  }
  func.func @transform_3(%arg0: i32) -> (i32, i32) {
    %c0_i32 = arith.constant 0 : i32
    %c0_i32_0 = arith.constant 0 : i32
    %c0_i32_1 = arith.constant 0 : i32
    return %c0_i32, %c0_i32_0 : i32, i32
  }
  func.func @transform_4(%arg0: i32) -> (i32, i32) {
    %c0_i32 = arith.constant 0 : i32
    %c0_i32_0 = arith.constant 0 : i32
    %c0_i32_1 = arith.constant 0 : i32
    return %c0_i32, %c0_i32_0 : i32, i32
  }
  func.func @transform_5(%arg0: i32) -> (i32, i32) {
    %c0_i32 = arith.constant 0 : i32
    %c0_i32_0 = arith.constant 0 : i32
    %c0_i32_1 = arith.constant 0 : i32
    return %c0_i32, %c0_i32_0 : i32, i32
  }
}

</mosaic_0001>

<llo_original>
// kernel: tpu_custom_call.1
$region0: #{tpu_custom_call.1}
  #allocation0 [shape = 'u32[]', space=smem, size = 0x4, offset = 0x4, fixed_abs, tag = 'smem constant byte address 0x4 - core index']
  #allocation1 [shape = 'u32[144,128]{1,0:T(1,128)}', space=vmem, size = 0x12000, scoped, tag = 'internal scratch']
  %s0 = inlined_call_operand.hbm [shape: bf16[456,128], index: 0, kind: input, shape index: {}]
  %s1 = inlined_call_operand.hbm [shape: bf16[128,128], index: 1, kind: input, shape index: {}]
  %s2 = inlined_call_operand.vmem [shape: f32[1,128], index: 2, kind: input, shape index: {}]
  %s3 = inlined_call_operand.vmem [shape: f32[1,128], index: 3, kind: input, shape index: {}]
  %s4 = inlined_call_operand.vmem [shape: f32[1,128], index: 4, kind: input, shape index: {}]
  %s5 = inlined_call_operand.hbm [shape: f32[456,128], index: 5, kind: output, shape index: {}]
  %s6 = sld [smem:[#allocation0]]
  $region38: #{tpu_custom_call.1} parent=0
    _
  %s8 = ssub.s32 1, %s6
  %s9 = scalar_select 0, %s8, %s6
  $region1: #{tpu_custom_call.1} parent=0
    #allocation2 [shape = 'u8[116736]{0}', space=vmem, size = 0x1c800, scoped, tag = 'input window, operand 0, single buffered']
    #allocation3 [shape = 's32[1]{0}', space=sflag, size = 0x4, scoped, tag = 'scoped memory for tpu_custom_call.1']
    #allocation4 [shape = 's32[1]{0}', space=sflag, size = 0x4, scoped, tag = 'scoped memory for tpu_custom_call.1']
    #allocation5 [shape = 'u8[32768]{0}', space=vmem, size = 0x8000, scoped, tag = 'input window, operand 1, single buffered']
    #allocation6 [shape = 's32[1]{0}', space=sflag, size = 0x4, scoped, tag = 'scoped memory for tpu_custom_call.1']
    #allocation7 [shape = 'u8[233472]{0}', space=vmem, size = 0x39000, scoped, tag = 'output window, operand 0, single buffered']
    %10 = vsyncpa [#allocation3], 0
    %11 = vsyncpa [#allocation6], 0
    %12 = vsyncpa [#allocation4], 0
    // Predicated region
    $region2: #{tpu_custom_call.1} parent=1 // pred_check
      _
    $region3: #{tpu_custom_call.1} parent=1 // pred_check_branch
      %14 = sbr.rel (0) target = $region5
    $region4: #{tpu_custom_call.1} parent=1 // pred_region
      %s16 = ssub.s32 3648, 3648
      %17 = vsyncadd [#allocation3], %s16
      %s18 = sshll.u32 [#allocation2], 4
      %s19 = int_to_ptr.vmem [resolvable:$true] %s18
      %24 = dma.hbm_to_vmem [thread:$0]  %s0, 3648, %s19, [#allocation3], 64, 64, 4
    $region5: #{tpu_custom_call.1} parent=1 // pred_fallthru
      _
    // Predicated region
    $region6: #{tpu_custom_call.1} parent=1 // pred_check
      _
    $region7: #{tpu_custom_call.1} parent=1 // pred_check_branch
      %26 = sbr.rel (0) target = $region9
    $region8: #{tpu_custom_call.1} parent=1 // pred_region
      %s28 = ssub.s32 1024, 1024
      %29 = vsyncadd [#allocation6], %s28
      %s30 = sshll.u32 [#allocation5], 4
      %s31 = int_to_ptr.vmem [resolvable:$true] %s30
      %36 = dma.hbm_to_vmem [thread:$0]  %s1, 1024, %s31, [#allocation6], 64, 64, 4
    $region9: #{tpu_custom_call.1} parent=1 // pred_fallthru
      _
    // Predicated region
    $region10: #{tpu_custom_call.1} parent=1 // pred_check
      _
    $region11: #{tpu_custom_call.1} parent=1 // pred_check_branch
      %38 = sbr.rel (0) target = $region13
    $region12: #{tpu_custom_call.1} parent=1 // pred_region
      _
    $region13: #{tpu_custom_call.1} parent=1 // pred_fallthru
      _
    // Predicated region
    $region14: #{tpu_custom_call.1} parent=1 // pred_check
      _
    $region15: #{tpu_custom_call.1} parent=1 // pred_check_branch
      %40 = sbr.rel (0) target = $region17
    $region16: #{tpu_custom_call.1} parent=1 // pred_region
      _
    $region17: #{tpu_custom_call.1} parent=1 // pred_fallthru
      _
    // Predicated region
    $region18: #{tpu_custom_call.1} parent=1 // pred_check
      _
    $region19: #{tpu_custom_call.1} parent=1 // pred_check_branch
      %42 = sbr.rel (0) target = $region21
    $region20: #{tpu_custom_call.1} parent=1 // pred_region
      _
    $region21: #{tpu_custom_call.1} parent=1 // pred_fallthru
      _
    // Predicated region
    $region22: #{tpu_custom_call.1} parent=1 // pred_check
      _
    $region23: #{tpu_custom_call.1} parent=1 // pred_check_branch
      %44 = sbr.rel (0) target = $region25
    $region24: #{tpu_custom_call.1} parent=1 // pred_region
      %45 = dma.done [#allocation3], 3648
    $region25: #{tpu_custom_call.1} parent=1 // pred_fallthru
      _
    // Predicated region
    $region26: #{tpu_custom_call.1} parent=1 // pred_check
      _
    $region27: #{tpu_custom_call.1} parent=1 // pred_check_branch
      %47 = sbr.rel (0) target = $region29
    $region28: #{tpu_custom_call.1} parent=1 // pred_region
      %48 = dma.done [#allocation6], 1024
    $region29: #{tpu_custom_call.1} parent=1 // pred_fallthru
      _
    %v50 = vld [vmem:[#allocation2] sm:$0xf]
    %v51 = vld [vmem:[#allocation2 + $0x4] sm:$0xf]
    %v52 = vld [vmem:[#allocation2 + $0x8] sm:$0xf]
    %v53 = vld [vmem:[#allocation2 + $0xc] sm:$0xf]
    %v54 = vld [vmem:[#allocation2 + $0x10] sm:$0xf]
    %v55 = vld [vmem:[#allocation2 + $0x14] sm:$0xf]
    %v56 = vld [vmem:[#allocation2 + $0x18] sm:$0xf]
    %v57 = vld [vmem:[#allocation2 + $0x1c] sm:$0xf]
    %v58 = vld [vmem:[#allocation2 + $0x20] sm:$0xf]
    %v59 = vld [vmem:[#allocation2 + $0x24] sm:$0xf]
    %v60 = vld [vmem:[#allocation2 + $0x28] sm:$0xf]
    %v61 = vld [vmem:[#allocation2 + $0x2c] sm:$0xf]
    %v62 = vld [vmem:[#allocation2 + $0x30] sm:$0xf]
    %v63 = vld [vmem:[#allocation2 + $0x34] sm:$0xf]
    %v64 = vld [vmem:[#allocation2 + $0x38] sm:$0xf]
    %v65 = vld [vmem:[#allocation2 + $0x3c] sm:$0xf]
    %v66 = vld [vmem:[#allocation2 + $0x40] sm:$0xf]
    %v67 = vld [vmem:[#allocation2 + $0x44] sm:$0xf]
    %v68 = vld [vmem:[#allocation2 + $0x48] sm:$0xf]
    %v69 = vld [vmem:[#allocation2 + $0x4c] sm:$0xf]
    %v70 = vld [vmem:[#allocation2 + $0x50] sm:$0xf]
    %v71 = vld [vmem:[#allocation2 + $0x54] sm:$0xf]
    %v72 = vld [vmem:[#allocation2 + $0x58] sm:$0xf]
    %v73 = vld [vmem:[#allocation2 + $0x5c] sm:$0xf]
    %v74 = vld [vmem:[#allocation2 + $0x60] sm:$0xf]
    %v75 = vld [vmem:[#allocation2 + $0x64] sm:$0xf]
    %v76 = vld [vmem:[#allocation2 + $0x68] sm:$0xf]
    %v77 = vld [vmem:[#allocation2 + $0x6c] sm:$0xf]
    %v78 = vld [vmem:[#allocation2 + $0x70] sm:$0xf]
    %v79 = vld [vmem:[#allocation2 + $0x74] sm:$0xf]
    %v80 = vld [vmem:[#allocation2 + $0x78] sm:$0xf]
    %v81 = vld [vmem:[#allocation2 + $0x7c] sm:$0xf]
    %v82 = vld [vmem:[#allocation2 + $0x80] sm:$0xf]
    %v83 = vld [vmem:[#allocation2 + $0x84] sm:$0xf]
    %v84 = vld [vmem:[#allocation2 + $0x88] sm:$0xf]
    %v85 = vld [vmem:[#allocation2 + $0x8c] sm:$0xf]
    %v86 = vld [vmem:[#allocation2 + $0x90] sm:$0xf]
    %v87 = vld [vmem:[#allocation2 + $0x94] sm:$0xf]
    %v88 = vld [vmem:[#allocation2 + $0x98] sm:$0xf]
    %v89 = vld [vmem:[#allocation2 + $0x9c] sm:$0xf]
    %v90 = vld [vmem:[#allocation2 + $0xa0] sm:$0xf]
    %v91 = vld [vmem:[#allocation2 + $0xa4] sm:$0xf]
    %v92 = vld [vmem:[#allocation2 + $0xa8] sm:$0xf]
    %v93 = vld [vmem:[#allocation2 + $0xac] sm:$0xf]
    %v94 = vld [vmem:[#allocation2 + $0xb0] sm:$0xf]
    %v95 = vld [vmem:[#allocation2 + $0xb4] sm:$0xf]
    %v96 = vld [vmem:[#allocation2 + $0xb8] sm:$0xf]
    %v97 = vld [vmem:[#allocation2 + $0xbc] sm:$0xf]
    %v98 = vld [vmem:[#allocation2 + $0xc0] sm:$0xf]
    %v99 = vld [vmem:[#allocation2 + $0xc4] sm:$0xf]
    %v100 = vld [vmem:[#allocation2 + $0xc8] sm:$0xf]
    %v101 = vld [vmem:[#allocation2 + $0xcc] sm:$0xf]
    %v102 = vld [vmem:[#allocation2 + $0xd0] sm:$0xf]
    %v103 = vld [vmem:[#allocation2 + $0xd4] sm:$0xf]
    %v104 = vld [vmem:[#allocation2 + $0xd8] sm:$0xf]
    %v105 = vld [vmem:[#allocation2 + $0xdc] sm:$0xf]
    %v106 = vld [vmem:[#allocation2 + $0xe0] sm:$0xf]
    %v107 = vld [vmem:[#allocation5] sm:$0xf]
    %v108 = vld [vmem:[#allocation5 + $0x4] sm:$0xf]
    %v109 = vld [vmem:[#allocation5 + $0x8] sm:$0xf]
    %v110 = vld [vmem:[#allocation5 + $0xc] sm:$0xf]
    %v111 = vld [vmem:[#allocation5 + $0x10] sm:$0xf]
    %v112 = vld [vmem:[#allocation5 + $0x14] sm:$0xf]
    %v113 = vld [vmem:[#allocation5 + $0x18] sm:$0xf]
    %v114 = vld [vmem:[#allocation5 + $0x1c] sm:$0xf]
    %v115 = vld [vmem:[#allocation5 + $0x20] sm:$0xf]
    %v116 = vld [vmem:[#allocation5 + $0x24] sm:$0xf]
    %v117 = vld [vmem:[#allocation5 + $0x28] sm:$0xf]
    %v118 = vld [vmem:[#allocation5 + $0x2c] sm:$0xf]
    %v119 = vld [vmem:[#allocation5 + $0x30] sm:$0xf]
    %v120 = vld [vmem:[#allocation5 + $0x34] sm:$0xf]
    %v121 = vld [vmem:[#allocation5 + $0x38] sm:$0xf]
    %v122 = vld [vmem:[#allocation5 + $0x3c] sm:$0xf]
    %v123 = vld [vmem:[%s2] sm:$0x1]
    %v125 = vlaneseq
    %v126 = vshrl.u32 %v125, 7
    %v127 = vsub.s32 0, %v126
    %v128 = vrot.slane %v123, %v127
    %v187 = vunpack.c.l.b16 %v50
    %v188 = vunpack.c.l.b16 %v51
    %v189 = vunpack.c.l.b16 %v52
    %v190 = vunpack.c.l.b16 %v53
    %v191 = vunpack.c.l.b16 %v54
    %v192 = vunpack.c.l.b16 %v55
    %v193 = vunpack.c.l.b16 %v56
    %v194 = vunpack.c.l.b16 %v57
    %v195 = vunpack.c.l.b16 %v58
    %v196 = vunpack.c.l.b16 %v59
    %v197 = vunpack.c.l.b16 %v60
    %v198 = vunpack.c.l.b16 %v61
    %v199 = vunpack.c.l.b16 %v62
    %v200 = vunpack.c.l.b16 %v63
    %v201 = vunpack.c.l.b16 %v64
    %v202 = vunpack.c.l.b16 %v65
    %v203 = vunpack.c.l.b16 %v66
    %v204 = vunpack.c.l.b16 %v67
    %v205 = vunpack.c.l.b16 %v68
    %v206 = vunpack.c.l.b16 %v69
    %v207 = vunpack.c.l.b16 %v70
    %v208 = vunpack.c.l.b16 %v71
    %v209 = vunpack.c.l.b16 %v72
    %v210 = vunpack.c.l.b16 %v73
    %v211 = vunpack.c.l.b16 %v74
    %v212 = vunpack.c.l.b16 %v75
    %v213 = vunpack.c.l.b16 %v76
    %v214 = vunpack.c.l.b16 %v77
    %v215 = vunpack.c.l.b16 %v78
    %v216 = vunpack.c.l.b16 %v79
    %v217 = vunpack.c.l.b16 %v80
    %v218 = vunpack.c.l.b16 %v81
    %v219 = vunpack.c.l.b16 %v82
    %v220 = vunpack.c.l.b16 %v83
    %v221 = vunpack.c.l.b16 %v84
    %v222 = vunpack.c.l.b16 %v85
    %v223 = vunpack.c.l.b16 %v86
    %v224 = vunpack.c.l.b16 %v87
    %v225 = vunpack.c.l.b16 %v88
    %v226 = vunpack.c.l.b16 %v89
    %v227 = vunpack.c.l.b16 %v90
    %v228 = vunpack.c.l.b16 %v91
    %v229 = vunpack.c.l.b16 %v92
    %v230 = vunpack.c.l.b16 %v93
    %v231 = vunpack.c.l.b16 %v94
    %v232 = vunpack.c.l.b16 %v95
    %v233 = vunpack.c.l.b16 %v96
    %v234 = vunpack.c.l.b16 %v97
    %v235 = vunpack.c.l.b16 %v98
    %v236 = vunpack.c.l.b16 %v99
    %v237 = vunpack.c.l.b16 %v100
    %v238 = vunpack.c.l.b16 %v101
    %v239 = vunpack.c.l.b16 %v102
    %v240 = vunpack.c.l.b16 %v103
    %v241 = vunpack.c.l.b16 %v104
    %v242 = vunpack.c.l.b16 %v105
    %v243 = vunpack.c.l.b16 %v106
    %v244 = vpack.c.b16 %v188, %v187
    %v245 = vpack.c.b16 %v190, %v189
    %v246 = vpack.c.b16 %v192, %v191
    %v247 = vpack.c.b16 %v194, %v193
    %v248 = vpack.c.b16 %v196, %v195
    %v249 = vpack.c.b16 %v198, %v197
    %v250 = vpack.c.b16 %v200, %v199
    %v251 = vpack.c.b16 %v202, %v201
    %v252 = vpack.c.b16 %v204, %v203
    %v253 = vpack.c.b16 %v206, %v205
    %v254 = vpack.c.b16 %v208, %v207
    %v255 = vpack.c.b16 %v210, %v209
    %v256 = vpack.c.b16 %v212, %v211
    %v257 = vpack.c.b16 %v214, %v213
    %v258 = vpack.c.b16 %v216, %v215
    %v259 = vpack.c.b16 %v218, %v217
    %v260 = vpack.c.b16 %v220, %v219
    %v261 = vpack.c.b16 %v222, %v221
    %v262 = vpack.c.b16 %v224, %v223
    %v263 = vpack.c.b16 %v226, %v225
    %v264 = vpack.c.b16 %v228, %v227
    %v265 = vpack.c.b16 %v230, %v229
    %v266 = vpack.c.b16 %v232, %v231
    %v267 = vpack.c.b16 %v234, %v233
    %v268 = vpack.c.b16 %v236, %v235
    %v269 = vpack.c.b16 %v238, %v237
    %v270 = vpack.c.b16 %v240, %v239
    %v271 = vpack.c.b16 %v242, %v241
    %v272 = vpack.c.b16 %v243, %v243
    %v318 = vunpack.c.l.b16 %v107
    %v319 = vunpack.c.l.b16 %v108
    %v320 = vunpack.c.l.b16 %v109
    %v321 = vunpack.c.l.b16 %v110
    %v322 = vunpack.c.l.b16 %v111
    %v323 = vunpack.c.l.b16 %v112
    %v324 = vunpack.c.l.b16 %v113
    %v325 = vunpack.c.l.b16 %v114
    %v326 = vunpack.c.l.b16 %v115
    %v327 = vunpack.c.l.b16 %v116
    %v328 = vunpack.c.l.b16 %v117
    %v329 = vunpack.c.l.b16 %v118
    %v330 = vunpack.c.l.b16 %v119
    %v331 = vunpack.c.l.b16 %v120
    %v332 = vunpack.c.l.b16 %v121
    %v333 = vunpack.c.l.b16 %v122
    %v334 = vpack.c.b16 %v319, %v318
    %v335 = vpack.c.b16 %v321, %v320
    %v336 = vpack.c.b16 %v323, %v322
    %v337 = vpack.c.b16 %v325, %v324
    %v338 = vpack.c.b16 %v327, %v326
    %v339 = vpack.c.b16 %v329, %v328
    %v340 = vpack.c.b16 %v331, %v330
    %v341 = vpack.c.b16 %v333, %v332
    %350 = vmatprep.subr.bf16.mxu0 0
    %351 = vmatpush1.bf16.msra.mxu0 %v334
    %352 = vmatprep.subr.bf16.mxu0 0
    %353 = vmatpush1.bf16.msra.mxu0 %v335
    %354 = vmatprep.subr.bf16.mxu0 0
    %355 = vmatpush1.bf16.msra.mxu0 %v336
    %356 = vmatprep.subr.bf16.mxu0 0
    %357 = vmatpush1.bf16.msra.mxu0 %v337
    %358 = vmatprep.subr.bf16.mxu0 0
    %359 = vmatpush1.bf16.msra.mxu0 %v338
    %360 = vmatprep.subr.bf16.mxu0 0
    %361 = vmatpush1.bf16.msra.mxu0 %v339
    %362 = vmatprep.subr.bf16.mxu0 0
    %363 = vmatpush1.bf16.msra.mxu0 %v340
    %364 = vmatprep.subr.bf16.mxu0 0
    %365 = vmatpush1.bf16.msra.mxu0 %v341
    %366 = vmatprep.subr.bf16.mxu0 0
    %367 = vmatpush1.bf16.msra.mxu0 0
    %368 = vmatprep.subr.bf16.mxu0 0
    %369 = vmatpush1.bf16.msra.mxu0 0
    %370 = vmatprep.subr.bf16.mxu0 0
    %371 = vmatpush1.bf16.msra.mxu0 0
    %372 = vmatprep.subr.bf16.mxu0 0
    %373 = vmatpush1.bf16.msra.mxu0 0
    %374 = vmatprep.subr.bf16.mxu0 0
    %375 = vmatpush1.bf16.msra.mxu0 0
    %376 = vmatprep.subr.bf16.mxu0 0
    %377 = vmatpush1.bf16.msra.mxu0 0
    %378 = vmatprep.subr.bf16.mxu0 0
    %379 = vmatpush1.bf16.msra.mxu0 0
    %380 = vmatprep.subr.bf16.mxu0 0
    %381 = vmatpush1.bf16.msra.mxu0 0
    %382 = vmatprep.mubr.bf16.mxu0 0
    %383 = vmatmul.mubr.bf16.gmra.mrb[0].mxu0 %v244
    %v384 = vpop.f32.mrb[0].mxu0
    %v385 = vadd.f32 %v128, %v384
    %v386 = vpop.f32.mrb[0].mxu0
    %v387 = vpop.f32.mrb[0].mxu0
    %v388 = vadd.f32 %v128, %v387
    %v389 = vpop.f32.mrb[0].mxu0
    %390 = vmatprep.mubr.bf16.mxu0 0
    %391 = vmatmul.mubr.bf16.gmra.mrb[0].mxu0 %v245
    %v392 = vpop.f32.mrb[0].mxu0
    %v393 = vadd.f32 %v128, %v392
    %v394 = vpop.f32.mrb[0].mxu0
    %v395 = vpop.f32.mrb[0].mxu0
    %v396 = vadd.f32 %v128, %v395
    %v397 = vpop.f32.mrb[0].mxu0
    %398 = vmatprep.mubr.bf16.mxu0 0
    %399 = vmatmul.mubr.bf16.gmra.mrb[0].mxu0 %v246
    %v400 = vpop.f32.mrb[0].mxu0
    %v401 = vadd.f32 %v128, %v400
    %v402 = vpop.f32.mrb[0].mxu0
    %v403 = vpop.f32.mrb[0].mxu0
    %v404 = vadd.f32 %v128, %v403
    %v405 = vpop.f32.mrb[0].mxu0
    %406 = vmatprep.mubr.bf16.mxu0 0
    %407 = vmatmul.mubr.bf16.gmra.mrb[0].mxu0 %v247
    %v408 = vpop.f32.mrb[0].mxu0
    %v409 = vadd.f32 %v128, %v408
    %v410 = vpop.f32.mrb[0].mxu0
    %v411 = vpop.f32.mrb[0].mxu0
    %v412 = vadd.f32 %v128, %v411
    %v413 = vpop.f32.mrb[0].mxu0
    %414 = vmatprep.mubr.bf16.mxu0 0
    %415 = vmatmul.mubr.bf16.gmra.mrb[0].mxu0 %v248
    %v416 = vpop.f32.mrb[0].mxu0
    %v417 = vadd.f32 %v128, %v416
    %v418 = vpop.f32.mrb[0].mxu0
    %v419 = vpop.f32.mrb[0].mxu0
    %v420 = vadd.f32 %v128, %v419
    %v421 = vpop.f32.mrb[0].mxu0
    %422 = vmatprep.mubr.bf16.mxu0 0
    %423 = vmatmul.mubr.bf16.gmra.mrb[0].mxu0 %v249
    %v424 = vpop.f32.mrb[0].mxu0
    %v425 = vadd.f32 %v128, %v424
    %v426 = vpop.f32.mrb[0].mxu0
    %v427 = vpop.f32.mrb[0].mxu0
    %v428 = vadd.f32 %v128, %v427
    %v429 = vpop.f32.mrb[0].mxu0
    %430 = vmatprep.mubr.bf16.mxu0 0
    %431 = vmatmul.mubr.bf16.gmra.mrb[0].mxu0 %v250
    %v432 = vpop.f32.mrb[0].mxu0
    %v433 = vadd.f32 %v128, %v432
    %v434 = vpop.f32.mrb[0].mxu0
    %v435 = vpop.f32.mrb[0].mxu0
    %v436 = vadd.f32 %v128, %v435
    %v437 = vpop.f32.mrb[0].mxu0
    %438 = vmatprep.mubr.bf16.mxu0 0
    %439 = vmatmul.mubr.bf16.gmra.mrb[0].mxu0 %v251
    %v440 = vpop.f32.mrb[0].mxu0
    %v441 = vadd.f32 %v128, %v440
    %v442 = vpop.f32.mrb[0].mxu0
    %v443 = vpop.f32.mrb[0].mxu0
    %v444 = vadd.f32 %v128, %v443
    %v445 = vpop.f32.mrb[0].mxu0
    %446 = vmatprep.mubr.bf16.mxu0 0
    %447 = vmatmul.mubr.bf16.gmra.mrb[0].mxu0 %v252
    %v448 = vpop.f32.mrb[0].mxu0
    %v449 = vadd.f32 %v128, %v448
    %v450 = vpop.f32.mrb[0].mxu0
    %v451 = vpop.f32.mrb[0].mxu0
    %v452 = vadd.f32 %v128, %v451
    %v453 = vpop.f32.mrb[0].mxu0
    %454 = vmatprep.mubr.bf16.mxu0 0
    %455 = vmatmul.mubr.bf16.gmra.mrb[0].mxu0 %v253
    %v456 = vpop.f32.mrb[0].mxu0
    %v457 = vadd.f32 %v128, %v456
    %v458 = vpop.f32.mrb[0].mxu0
    %v459 = vpop.f32.mrb[0].mxu0
    %v460 = vadd.f32 %v128, %v459
    %v461 = vpop.f32.mrb[0].mxu0
    %462 = vmatprep.mubr.bf16.mxu0 0
    %463 = vmatmul.mubr.bf16.gmra.mrb[0].mxu0 %v254
    %v464 = vpop.f32.mrb[0].mxu0
    %v465 = vadd.f32 %v128, %v464
    %v466 = vpop.f32.mrb[0].mxu0
    %v467 = vpop.f32.mrb[0].mxu0
    %v468 = vadd.f32 %v128, %v467
    %v469 = vpop.f32.mrb[0].mxu0
    %470 = vmatprep.mubr.bf16.mxu0 0
    %471 = vmatmul.mubr.bf16.gmra.mrb[0].mxu0 %v255
    %v472 = vpop.f32.mrb[0].mxu0
    %v473 = vadd.f32 %v128, %v472
    %v474 = vpop.f32.mrb[0].mxu0
    %v475 = vpop.f32.mrb[0].mxu0
    %v476 = vadd.f32 %v128, %v475
    %v477 = vpop.f32.mrb[0].mxu0
    %478 = vmatprep.mubr.bf16.mxu0 0
    %479 = vmatmul.mubr.bf16.gmra.mrb[0].mxu0 %v256
    %v480 = vpop.f32.mrb[0].mxu0
    %v481 = vadd.f32 %v128, %v480
    %v482 = vpop.f32.mrb[0].mxu0
    %v483 = vpop.f32.mrb[0].mxu0
    %v484 = vadd.f32 %v128, %v483
    %v485 = vpop.f32.mrb[0].mxu0
    %486 = vmatprep.mubr.bf16.mxu0 0
    %487 = vmatmul.mubr.bf16.gmra.mrb[0].mxu0 %v257
    %v488 = vpop.f32.mrb[0].mxu0
    %v489 = vadd.f32 %v128, %v488
    %v490 = vpop.f32.mrb[0].mxu0
    %v491 = vpop.f32.mrb[0].mxu0
    %v492 = vadd.f32 %v128, %v491
    %v493 = vpop.f32.mrb[0].mxu0
    %494 = vmatprep.mubr.bf16.mxu0 0
    %495 = vmatmul.mubr.bf16.gmra.mrb[0].mxu0 %v258
    %v496 = vpop.f32.mrb[0].mxu0
    %v497 = vadd.f32 %v128, %v496
    %v498 = vpop.f32.mrb[0].mxu0
    %v499 = vpop.f32.mrb[0].mxu0
    %v500 = vadd.f32 %v128, %v499
    %v501 = vpop.f32.mrb[0].mxu0
    %502 = vmatprep.mubr.bf16.mxu0 0
    %503 = vmatmul.mubr.bf16.gmra.mrb[0].mxu0 %v259
    %v504 = vpop.f32.mrb[0].mxu0
    %v505 = vadd.f32 %v128, %v504
    %v506 = vpop.f32.mrb[0].mxu0
    %v507 = vpop.f32.mrb[0].mxu0
    %v508 = vadd.f32 %v128, %v507
    %v509 = vpop.f32.mrb[0].mxu0
    %510 = vmatprep.mubr.bf16.mxu0 0
    %511 = vmatmul.mubr.bf16.gmra.mrb[0].mxu0 %v260
    %v512 = vpop.f32.mrb[0].mxu0
    %v513 = vadd.f32 %v128, %v512
    %v514 = vpop.f32.mrb[0].mxu0
    %v515 = vpop.f32.mrb[0].mxu0
    %v516 = vadd.f32 %v128, %v515
    %v517 = vpop.f32.mrb[0].mxu0
    %518 = vmatprep.mubr.bf16.mxu0 0
    %519 = vmatmul.mubr.bf16.gmra.mrb[0].mxu0 %v261
    %v520 = vpop.f32.mrb[0].mxu0
    %v521 = vadd.f32 %v128, %v520
    %v522 = vpop.f32.mrb[0].mxu0
    %v523 = vpop.f32.mrb[0].mxu0
    %v524 = vadd.f32 %v128, %v523
    %v525 = vpop.f32.mrb[0].mxu0
    %526 = vmatprep.mubr.bf16.mxu0 0
    %527 = vmatmul.mubr.bf16.gmra.mrb[0].mxu0 %v262
    %v528 = vpop.f32.mrb[0].mxu0
    %v529 = vadd.f32 %v128, %v528
    %v530 = vpop.f32.mrb[0].mxu0
    %v531 = vpop.f32.mrb[0].mxu0
    %v532 = vadd.f32 %v128, %v531
    %v533 = vpop.f32.mrb[0].mxu0
    %534 = vmatprep.mubr.bf16.mxu0 0
    %535 = vmatmul.mubr.bf16.gmra.mrb[0].mxu0 %v263
    %v536 = vpop.f32.mrb[0].mxu0
    %v537 = vadd.f32 %v128, %v536
    %v538 = vpop.f32.mrb[0].mxu0
    %v539 = vpop.f32.mrb[0].mxu0
    %v540 = vadd.f32 %v128, %v539
    %v541 = vpop.f32.mrb[0].mxu0
    %542 = vmatprep.mubr.bf16.mxu0 0
    %543 = vmatmul.mubr.bf16.gmra.mrb[0].mxu0 %v264
    %v544 = vpop.f32.mrb[0].mxu0
    %v545 = vadd.f32 %v128, %v544
    %v546 = vpop.f32.mrb[0].mxu0
    %v547 = vpop.f32.mrb[0].mxu0
    %v548 = vadd.f32 %v128, %v547
    %v549 = vpop.f32.mrb[0].mxu0
    %550 = vmatprep.mubr.bf16.mxu0 0
    %551 = vmatmul.mubr.bf16.gmra.mrb[0].mxu0 %v265
    %v552 = vpop.f32.mrb[0].mxu0
    %v553 = vadd.f32 %v128, %v552
    %v554 = vpop.f32.mrb[0].mxu0
    %v555 = vpop.f32.mrb[0].mxu0
    %v556 = vadd.f32 %v128, %v555
    %v557 = vpop.f32.mrb[0].mxu0
    %558 = vmatprep.mubr.bf16.mxu0 0
    %559 = vmatmul.mubr.bf16.gmra.mrb[0].mxu0 %v266
    %v560 = vpop.f32.mrb[0].mxu0
    %v561 = vadd.f32 %v128, %v560
    %v562 = vpop.f32.mrb[0].mxu0
    %v563 = vpop.f32.mrb[0].mxu0
    %v564 = vadd.f32 %v128, %v563
    %v565 = vpop.f32.mrb[0].mxu0
    %566 = vmatprep.mubr.bf16.mxu0 0
    %567 = vmatmul.mubr.bf16.gmra.mrb[0].mxu0 %v267
    %v568 = vpop.f32.mrb[0].mxu0
    %v569 = vadd.f32 %v128, %v568
    %v570 = vpop.f32.mrb[0].mxu0
    %v571 = vpop.f32.mrb[0].mxu0
    %v572 = vadd.f32 %v128, %v571
    %v573 = vpop.f32.mrb[0].mxu0
    %574 = vmatprep.mubr.bf16.mxu0 0
    %575 = vmatmul.mubr.bf16.gmra.mrb[0].mxu0 %v268
    %v576 = vpop.f32.mrb[0].mxu0
    %v577 = vadd.f32 %v128, %v576
    %v578 = vpop.f32.mrb[0].mxu0
    %v579 = vpop.f32.mrb[0].mxu0
    %v580 = vadd.f32 %v128, %v579
    %v581 = vpop.f32.mrb[0].mxu0
    %582 = vmatprep.mubr.bf16.mxu0 0
    %583 = vmatmul.mubr.bf16.gmra.mrb[0].mxu0 %v269
    %v584 = vpop.f32.mrb[0].mxu0
    %v585 = vadd.f32 %v128, %v584
    %v586 = vpop.f32.mrb[0].mxu0
    %v587 = vpop.f32.mrb[0].mxu0
    %v588 = vadd.f32 %v128, %v587
    %v589 = vpop.f32.mrb[0].mxu0
    %590 = vmatprep.mubr.bf16.mxu0 0
    %591 = vmatmul.mubr.bf16.gmra.mrb[0].mxu0 %v270
    %v592 = vpop.f32.mrb[0].mxu0
    %v593 = vadd.f32 %v128, %v592
    %v594 = vpop.f32.mrb[0].mxu0
    %v595 = vpop.f32.mrb[0].mxu0
    %v596 = vadd.f32 %v128, %v595
    %v597 = vpop.f32.mrb[0].mxu0
    %598 = vmatprep.mubr.bf16.mxu0 0
    %599 = vmatmul.mubr.bf16.gmra.mrb[0].mxu0 %v271
    %v600 = vpop.f32.mrb[0].mxu0
    %v601 = vadd.f32 %v128, %v600
    %v602 = vpop.f32.mrb[0].mxu0
    %v603 = vpop.f32.mrb[0].mxu0
    %v604 = vadd.f32 %v128, %v603
    %v605 = vpop.f32.mrb[0].mxu0
    %606 = vmatprep.mubr.bf16.mxu0 0
    %607 = vmatmul.mubr.bf16.gmra.mrb[0].mxu0 %v272
    %v608 = vpop.f32.mrb[0].mxu0
    %v609 = vadd.f32 %v128, %v608
    %v610 = vpop.f32.mrb[0].mxu0
    %v611 = vpop.f32.mrb[0].mxu0
    %v612 = vpop.f32.mrb[0].mxu0
    %613 = vdwg.mxu0
    %v614 = vlaneseq
    %v615 = vshrl.u32 %v614, 7
    %v616 = vadd.s32 %v615, 8
    %v617 = vadd.s32 %v615, 16
    %v618 = vadd.s32 %v615, 24
    %v619 = vadd.s32 %v615, 32
    %v620 = vadd.s32 %v615, 40
    %v621 = vadd.s32 %v615, 48
    %v622 = vadd.s32 %v615, 56
    %v623 = vadd.s32 %v615, 64
    %v624 = vadd.s32 %v615, 72
    %v625 = vadd.s32 %v615, 80
    %v626 = vadd.s32 %v615, 88
    %v627 = vadd.s32 %v615, 96
    %v628 = vadd.s32 %v615, 104
    %v629 = vadd.s32 %v615, 112
    %v630 = vadd.s32 %v615, 120
    %v631 = vadd.s32 %v615, 128
    %v632 = vadd.s32 %v615, 136
    %v633 = vadd.s32 %v615, 144
    %v634 = vadd.s32 %v615, 152
    %v635 = vadd.s32 %v615, 160
    %v636 = vadd.s32 %v615, 168
    %v637 = vadd.s32 %v615, 176
    %v638 = vadd.s32 %v615, 184
    %v639 = vadd.s32 %v615, 192
    %v640 = vadd.s32 %v615, 200
    %v641 = vadd.s32 %v615, 208
    %v642 = vadd.s32 %v615, 216
    %v643 = vadd.s32 %v615, 224
    %v644 = vadd.s32 %v615, 232
    %v645 = vadd.s32 %v615, 240
    %v646 = vadd.s32 %v615, 248
    %v647 = vadd.s32 %v615, 256
    %v648 = vadd.s32 %v615, 264
    %v649 = vadd.s32 %v615, 272
    %v650 = vadd.s32 %v615, 280
    %v651 = vadd.s32 %v615, 288
    %v652 = vadd.s32 %v615, 296
    %v653 = vadd.s32 %v615, 304
    %v654 = vadd.s32 %v615, 312
    %v655 = vadd.s32 %v615, 320
    %v656 = vadd.s32 %v615, 328
    %v657 = vadd.s32 %v615, 336
    %v658 = vadd.s32 %v615, 344
    %v659 = vadd.s32 %v615, 352
    %v660 = vadd.s32 %v615, 360
    %v661 = vadd.s32 %v615, 368
    %v662 = vadd.s32 %v615, 376
    %v663 = vadd.s32 %v615, 384
    %v664 = vadd.s32 %v615, 392
    %v665 = vadd.s32 %v615, 400
    %v666 = vadd.s32 %v615, 408
    %v667 = vadd.s32 %v615, 416
    %v668 = vadd.s32 %v615, 424
    %v669 = vadd.s32 %v615, 432
    %v670 = vadd.s32 %v615, 440
    %v671 = vadd.s32 %v615, 448
    %vm672 = vcmp.lt.s32.totalorder %v615, 450
    %vm673 = vcmp.lt.s32.totalorder %v616, 450
    %vm674 = vcmp.lt.s32.totalorder %v617, 450
    %vm675 = vcmp.lt.s32.totalorder %v618, 450
    %vm676 = vcmp.lt.s32.totalorder %v619, 450
    %vm677 = vcmp.lt.s32.totalorder %v620, 450
    %vm678 = vcmp.lt.s32.totalorder %v621, 450
    %vm679 = vcmp.lt.s32.totalorder %v622, 450
    %vm680 = vcmp.lt.s32.totalorder %v623, 450
    %vm681 = vcmp.lt.s32.totalorder %v624, 450
    %vm682 = vcmp.lt.s32.totalorder %v625, 450
    %vm683 = vcmp.lt.s32.totalorder %v626, 450
    %vm684 = vcmp.lt.s32.totalorder %v627, 450
    %vm685 = vcmp.lt.s32.totalorder %v628, 450
    %vm686 = vcmp.lt.s32.totalorder %v629, 450
    %vm687 = vcmp.lt.s32.totalorder %v630, 450
    %vm688 = vcmp.lt.s32.totalorder %v631, 450
    %vm689 = vcmp.lt.s32.totalorder %v632, 450
    %vm690 = vcmp.lt.s32.totalorder %v633, 450
    %vm691 = vcmp.lt.s32.totalorder %v634, 450
    %vm692 = vcmp.lt.s32.totalorder %v635, 450
    %vm693 = vcmp.lt.s32.totalorder %v636, 450
    %vm694 = vcmp.lt.s32.totalorder %v637, 450
    %vm695 = vcmp.lt.s32.totalorder %v638, 450
    %vm696 = vcmp.lt.s32.totalorder %v639, 450
    %vm697 = vcmp.lt.s32.totalorder %v640, 450
    %vm698 = vcmp.lt.s32.totalorder %v641, 450
    %vm699 = vcmp.lt.s32.totalorder %v642, 450
    %vm700 = vcmp.lt.s32.totalorder %v643, 450
    %vm701 = vcmp.lt.s32.totalorder %v644, 450
    %vm702 = vcmp.lt.s32.totalorder %v645, 450
    %vm703 = vcmp.lt.s32.totalorder %v646, 450
    %vm704 = vcmp.lt.s32.totalorder %v647, 450
    %vm705 = vcmp.lt.s32.totalorder %v648, 450
    %vm706 = vcmp.lt.s32.totalorder %v649, 450
    %vm707 = vcmp.lt.s32.totalorder %v650, 450
    %vm708 = vcmp.lt.s32.totalorder %v651, 450
    %vm709 = vcmp.lt.s32.totalorder %v652, 450
    %vm710 = vcmp.lt.s32.totalorder %v653, 450
    %vm711 = vcmp.lt.s32.totalorder %v654, 450
    %vm712 = vcmp.lt.s32.totalorder %v655, 450
    %vm713 = vcmp.lt.s32.totalorder %v656, 450
    %vm714 = vcmp.lt.s32.totalorder %v657, 450
    %vm715 = vcmp.lt.s32.totalorder %v658, 450
    %vm716 = vcmp.lt.s32.totalorder %v659, 450
    %vm717 = vcmp.lt.s32.totalorder %v660, 450
    %vm718 = vcmp.lt.s32.totalorder %v661, 450
    %vm719 = vcmp.lt.s32.totalorder %v662, 450
    %vm720 = vcmp.lt.s32.totalorder %v663, 450
    %vm721 = vcmp.lt.s32.totalorder %v664, 450
    %vm722 = vcmp.lt.s32.totalorder %v665, 450
    %vm723 = vcmp.lt.s32.totalorder %v666, 450
    %vm724 = vcmp.lt.s32.totalorder %v667, 450
    %vm725 = vcmp.lt.s32.totalorder %v668, 450
    %vm726 = vcmp.lt.s32.totalorder %v669, 450
    %vm727 = vcmp.lt.s32.totalorder %v670, 450
    %vm728 = vcmp.lt.s32.totalorder %v671, 450
    %v729 = vsel %vm672, 1, 0
    %v730 = vsel %vm673, 1, 0
    %v731 = vsel %vm674, 1, 0
    %v732 = vsel %vm675, 1, 0
    %v733 = vsel %vm676, 1, 0
    %v734 = vsel %vm677, 1, 0
    %v735 = vsel %vm678, 1, 0
    %v736 = vsel %vm679, 1, 0
    %v737 = vsel %vm680, 1, 0
    %v738 = vsel %vm681, 1, 0
    %v739 = vsel %vm682, 1, 0
    %v740 = vsel %vm683, 1, 0
    %v741 = vsel %vm684, 1, 0
    %v742 = vsel %vm685, 1, 0
    %v743 = vsel %vm686, 1, 0
    %v744 = vsel %vm687, 1, 0
    %v745 = vsel %vm688, 1, 0
    %v746 = vsel %vm689, 1, 0
    %v747 = vsel %vm690, 1, 0
    %v748 = vsel %vm691, 1, 0
    %v749 = vsel %vm692, 1, 0
    %v750 = vsel %vm693, 1, 0
    %v751 = vsel %vm694, 1, 0
    %v752 = vsel %vm695, 1, 0
    %v753 = vsel %vm696, 1, 0
    %v754 = vsel %vm697, 1, 0
    %v755 = vsel %vm698, 1, 0
    %v756 = vsel %vm699, 1, 0
    %v757 = vsel %vm700, 1, 0
    %v758 = vsel %vm701, 1, 0
    %v759 = vsel %vm702, 1, 0
    %v760 = vsel %vm703, 1, 0
    %v761 = vsel %vm704, 1, 0
    %v762 = vsel %vm705, 1, 0
    %v763 = vsel %vm706, 1, 0
    %v764 = vsel %vm707, 1, 0
    %v765 = vsel %vm708, 1, 0
    %v766 = vsel %vm709, 1, 0
    %v767 = vsel %vm710, 1, 0
    %v768 = vsel %vm711, 1, 0
    %v769 = vsel %vm712, 1, 0
    %v770 = vsel %vm713, 1, 0
    %v771 = vsel %vm714, 1, 0
    %v772 = vsel %vm715, 1, 0
    %v773 = vsel %vm716, 1, 0
    %v774 = vsel %vm717, 1, 0
    %v775 = vsel %vm718, 1, 0
    %v776 = vsel %vm719, 1, 0
    %v777 = vsel %vm720, 1, 0
    %v778 = vsel %vm721, 1, 0
    %v779 = vsel %vm722, 1, 0
    %v780 = vsel %vm723, 1, 0
    %v781 = vsel %vm724, 1, 0
    %v782 = vsel %vm725, 1, 0
    %v783 = vsel %vm726, 1, 0
    %v784 = vsel %vm727, 1, 0
    %v785 = vsel %vm728, 1, 0
    %vm786 = vcmp.eq.s32.totalorder %v729, 1
    %vm787 = vcmp.eq.s32.totalorder %v730, 1
    %vm788 = vcmp.eq.s32.totalorder %v731, 1
    %vm789 = vcmp.eq.s32.totalorder %v732, 1
    %vm790 = vcmp.eq.s32.totalorder %v733, 1
    %vm791 = vcmp.eq.s32.totalorder %v734, 1
    %vm792 = vcmp.eq.s32.totalorder %v735, 1
    %vm793 = vcmp.eq.s32.totalorder %v736, 1
    %vm794 = vcmp.eq.s32.totalorder %v737, 1
    %vm795 = vcmp.eq.s32.totalorder %v738, 1
    %vm796 = vcmp.eq.s32.totalorder %v739, 1
    %vm797 = vcmp.eq.s32.totalorder %v740, 1
    %vm798 = vcmp.eq.s32.totalorder %v741, 1
    %vm799 = vcmp.eq.s32.totalorder %v742, 1
    %vm800 = vcmp.eq.s32.totalorder %v743, 1
    %vm801 = vcmp.eq.s32.totalorder %v744, 1
    %vm802 = vcmp.eq.s32.totalorder %v745, 1
    %vm803 = vcmp.eq.s32.totalorder %v746, 1
    %vm804 = vcmp.eq.s32.totalorder %v747, 1
    %vm805 = vcmp.eq.s32.totalorder %v748, 1
    %vm806 = vcmp.eq.s32.totalorder %v749, 1
    %vm807 = vcmp.eq.s32.totalorder %v750, 1
    %vm808 = vcmp.eq.s32.totalorder %v751, 1
    %vm809 = vcmp.eq.s32.totalorder %v752, 1
    %vm810 = vcmp.eq.s32.totalorder %v753, 1
    %vm811 = vcmp.eq.s32.totalorder %v754, 1
    %vm812 = vcmp.eq.s32.totalorder %v755, 1
    %vm813 = vcmp.eq.s32.totalorder %v756, 1
    %vm814 = vcmp.eq.s32.totalorder %v757, 1
    %vm815 = vcmp.eq.s32.totalorder %v758, 1
    %vm816 = vcmp.eq.s32.totalorder %v759, 1
    %vm817 = vcmp.eq.s32.totalorder %v760, 1
    %vm818 = vcmp.eq.s32.totalorder %v761, 1
    %vm819 = vcmp.eq.s32.totalorder %v762, 1
    %vm820 = vcmp.eq.s32.totalorder %v763, 1
    %vm821 = vcmp.eq.s32.totalorder %v764, 1
    %vm822 = vcmp.eq.s32.totalorder %v765, 1
    %vm823 = vcmp.eq.s32.totalorder %v766, 1
    %vm824 = vcmp.eq.s32.totalorder %v767, 1
    %vm825 = vcmp.eq.s32.totalorder %v768, 1
    %vm826 = vcmp.eq.s32.totalorder %v769, 1
    %vm827 = vcmp.eq.s32.totalorder %v770, 1
    %vm828 = vcmp.eq.s32.totalorder %v771, 1
    %vm829 = vcmp.eq.s32.totalorder %v772, 1
    %vm830 = vcmp.eq.s32.totalorder %v773, 1
    %vm831 = vcmp.eq.s32.totalorder %v774, 1
    %vm832 = vcmp.eq.s32.totalorder %v775, 1
    %vm833 = vcmp.eq.s32.totalorder %v776, 1
    %vm834 = vcmp.eq.s32.totalorder %v777, 1
    %vm835 = vcmp.eq.s32.totalorder %v778, 1
    %vm836 = vcmp.eq.s32.totalorder %v779, 1
    %vm837 = vcmp.eq.s32.totalorder %v780, 1
    %vm838 = vcmp.eq.s32.totalorder %v781, 1
    %vm839 = vcmp.eq.s32.totalorder %v782, 1
    %vm840 = vcmp.eq.s32.totalorder %v783, 1
    %vm841 = vcmp.eq.s32.totalorder %v784, 1
    %vm842 = vcmp.eq.s32.totalorder %v785, 1
    %v843 = vsel %vm786, %v385, 0.0
    %v844 = vsel %vm787, %v388, 0.0
    %v845 = vsel %vm788, %v393, 0.0
    %v846 = vsel %vm789, %v396, 0.0
    %v847 = vsel %vm790, %v401, 0.0
    %v848 = vsel %vm791, %v404, 0.0
    %v849 = vsel %vm792, %v409, 0.0
    %v850 = vsel %vm793, %v412, 0.0
    %v851 = vsel %vm794, %v417, 0.0
    %v852 = vsel %vm795, %v420, 0.0
    %v853 = vsel %vm796, %v425, 0.0
    %v854 = vsel %vm797, %v428, 0.0
    %v855 = vsel %vm798, %v433, 0.0
    %v856 = vsel %vm799, %v436, 0.0
    %v857 = vsel %vm800, %v441, 0.0
    %v858 = vsel %vm801, %v444, 0.0
    %v859 = vsel %vm802, %v449, 0.0
    %v860 = vsel %vm803, %v452, 0.0
    %v861 = vsel %vm804, %v457, 0.0
    %v862 = vsel %vm805, %v460, 0.0
    %v863 = vsel %vm806, %v465, 0.0
    %v864 = vsel %vm807, %v468, 0.0
    %v865 = vsel %vm808, %v473, 0.0
    %v866 = vsel %vm809, %v476, 0.0
    %v867 = vsel %vm810, %v481, 0.0
    %v868 = vsel %vm811, %v484, 0.0
    %v869 = vsel %vm812, %v489, 0.0
    %v870 = vsel %vm813, %v492, 0.0
    %v871 = vsel %vm814, %v497, 0.0
    %v872 = vsel %vm815, %v500, 0.0
    %v873 = vsel %vm816, %v505, 0.0
    %v874 = vsel %vm817, %v508, 0.0
    %v875 = vsel %vm818, %v513, 0.0
    %v876 = vsel %vm819, %v516, 0.0
    %v877 = vsel %vm820, %v521, 0.0
    %v878 = vsel %vm821, %v524, 0.0
    %v879 = vsel %vm822, %v529, 0.0
    %v880 = vsel %vm823, %v532, 0.0
    %v881 = vsel %vm824, %v537, 0.0
    %v882 = vsel %vm825, %v540, 0.0
    %v883 = vsel %vm826, %v545, 0.0
    %v884 = vsel %vm827, %v548, 0.0
    %v885 = vsel %vm828, %v553, 0.0
    %v886 = vsel %vm829, %v556, 0.0
    %v887 = vsel %vm830, %v561, 0.0
    %v888 = vsel %vm831, %v564, 0.0
    %v889 = vsel %vm832, %v569, 0.0
    %v890 = vsel %vm833, %v572, 0.0
    %v891 = vsel %vm834, %v577, 0.0
    %v892 = vsel %vm835, %v580, 0.0
    %v893 = vsel %vm836, %v585, 0.0
    %v894 = vsel %vm837, %v588, 0.0
    %v895 = vsel %vm838, %v593, 0.0
    %v896 = vsel %vm839, %v596, 0.0
    %v897 = vsel %vm840, %v601, 0.0
    %v898 = vsel %vm841, %v604, 0.0
    %v899 = vsel %vm842, %v609, 0.0
    %v900 = vadd.f32 %v843, %v844
    %v901 = vadd.f32 %v900, %v845
    %v902 = vadd.f32 %v901, %v846
    %v903 = vadd.f32 %v902, %v847
    %v904 = vadd.f32 %v903, %v848
    %v905 = vadd.f32 %v904, %v849
    %v906 = vadd.f32 %v905, %v850
    %v907 = vadd.f32 %v906, %v851
    %v908 = vadd.f32 %v907, %v852
    %v909 = vadd.f32 %v908, %v853
    %v910 = vadd.f32 %v909, %v854
    %v911 = vadd.f32 %v910, %v855
    %v912 = vadd.f32 %v911, %v856
    %v913 = vadd.f32 %v912, %v857
    %v914 = vadd.f32 %v913, %v858
    %v915 = vadd.f32 %v914, %v859
    %v916 = vadd.f32 %v915, %v860
    %v917 = vadd.f32 %v916, %v861
    %v918 = vadd.f32 %v917, %v862
    %v919 = vadd.f32 %v918, %v863
    %v920 = vadd.f32 %v919, %v864
    %v921 = vadd.f32 %v920, %v865
    %v922 = vadd.f32 %v921, %v866
    %v923 = vadd.f32 %v922, %v867
    %v924 = vadd.f32 %v923, %v868
    %v925 = vadd.f32 %v924, %v869
    %v926 = vadd.f32 %v925, %v870
    %v927 = vadd.f32 %v926, %v871
    %v928 = vadd.f32 %v927, %v872
    %v929 = vadd.f32 %v928, %v873
    %v930 = vadd.f32 %v929, %v874
    %v931 = vadd.f32 %v930, %v875
    %v932 = vadd.f32 %v931, %v876
    %v933 = vadd.f32 %v932, %v877
    %v934 = vadd.f32 %v933, %v878
    %v935 = vadd.f32 %v934, %v879
    %v936 = vadd.f32 %v935, %v880
    %v937 = vadd.f32 %v936, %v881
    %v938 = vadd.f32 %v937, %v882
    %v939 = vadd.f32 %v938, %v883
    %v940 = vadd.f32 %v939, %v884
    %v941 = vadd.f32 %v940, %v885
    %v942 = vadd.f32 %v941, %v886
    %v943 = vadd.f32 %v942, %v887
    %v944 = vadd.f32 %v943, %v888
    %v945 = vadd.f32 %v944, %v889
    %v946 = vadd.f32 %v945, %v890
    %v947 = vadd.f32 %v946, %v891
    %v948 = vadd.f32 %v947, %v892
    %v949 = vadd.f32 %v948, %v893
    %v950 = vadd.f32 %v949, %v894
    %v951 = vadd.f32 %v950, %v895
    %v952 = vadd.f32 %v951, %v896
    %v953 = vadd.f32 %v952, %v897
    %v954 = vadd.f32 %v953, %v898
    %v955 = vadd.f32 %v954, %v899
    %v956 = vrot.slane %v955, 4
    %v957 = vadd.f32 %v955, %v956
    %v958 = vrot.slane %v957, 2
    %v959 = vadd.f32 %v957, %v958
    %v960 = vrot.slane %v959, 1
    %v961 = vadd.f32 %v959, %v960
    %v962 = vmul.f32 %v961, 0.0022222223
    %v963 = vsub.f32 %v385, %v962
    %v964 = vsub.f32 %v388, %v962
    %v965 = vsub.f32 %v393, %v962
    %v966 = vsub.f32 %v396, %v962
    %v967 = vsub.f32 %v401, %v962
    %v968 = vsub.f32 %v404, %v962
    %v969 = vsub.f32 %v409, %v962
    %v970 = vsub.f32 %v412, %v962
    %v971 = vsub.f32 %v417, %v962
    %v972 = vsub.f32 %v420, %v962
    %v973 = vsub.f32 %v425, %v962
    %v974 = vsub.f32 %v428, %v962
    %v975 = vsub.f32 %v433, %v962
    %v976 = vsub.f32 %v436, %v962
    %v977 = vsub.f32 %v441, %v962
    %v978 = vsub.f32 %v444, %v962
    %v979 = vsub.f32 %v449, %v962
    %v980 = vsub.f32 %v452, %v962
    %v981 = vsub.f32 %v457, %v962
    %v982 = vsub.f32 %v460, %v962
    %v983 = vsub.f32 %v465, %v962
    %v984 = vsub.f32 %v468, %v962
    %v985 = vsub.f32 %v473, %v962
    %v986 = vsub.f32 %v476, %v962
    %v987 = vsub.f32 %v481, %v962
    %v988 = vsub.f32 %v484, %v962
    %v989 = vsub.f32 %v489, %v962
    %v990 = vsub.f32 %v492, %v962
    %v991 = vsub.f32 %v497, %v962
    %v992 = vsub.f32 %v500, %v962
    %v993 = vsub.f32 %v505, %v962
    %v994 = vsub.f32 %v508, %v962
    %v995 = vsub.f32 %v513, %v962
    %v996 = vsub.f32 %v516, %v962
    %v997 = vsub.f32 %v521, %v962
    %v998 = vsub.f32 %v524, %v962
    %v999 = vsub.f32 %v529, %v962
    %v1000 = vsub.f32 %v532, %v962
    %v1001 = vsub.f32 %v537, %v962
    %v1002 = vsub.f32 %v540, %v962
    %v1003 = vsub.f32 %v545, %v962
    %v1004 = vsub.f32 %v548, %v962
    %v1005 = vsub.f32 %v553, %v962
    %v1006 = vsub.f32 %v556, %v962
    %v1007 = vsub.f32 %v561, %v962
    %v1008 = vsub.f32 %v564, %v962
    %v1009 = vsub.f32 %v569, %v962
    %v1010 = vsub.f32 %v572, %v962
    %v1011 = vsub.f32 %v577, %v962
    %v1012 = vsub.f32 %v580, %v962
    %v1013 = vsub.f32 %v585, %v962
    %v1014 = vsub.f32 %v588, %v962
    %v1015 = vsub.f32 %v593, %v962
    %v1016 = vsub.f32 %v596, %v962
    %v1017 = vsub.f32 %v601, %v962
    %v1018 = vsub.f32 %v604, %v962
    %v1019 = vsub.f32 %v609, %v962
    %v1020 = vsel %vm786, %v963, 0.0
    %v1021 = vsel %vm787, %v964, 0.0
    %v1022 = vsel %vm788, %v965, 0.0
    %v1023 = vsel %vm789, %v966, 0.0
    %v1024 = vsel %vm790, %v967, 0.0
    %v1025 = vsel %vm791, %v968, 0.0
    %v1026 = vsel %vm792, %v969, 0.0
    %v1027 = vsel %vm793, %v970, 0.0
    %v1028 = vsel %vm794, %v971, 0.0
    %v1029 = vsel %vm795, %v972, 0.0
    %v1030 = vsel %vm796, %v973, 0.0
    %v1031 = vsel %vm797, %v974, 0.0
    %v1032 = vsel %vm798, %v975, 0.0
    %v1033 = vsel %vm799, %v976, 0.0
    %v1034 = vsel %vm800, %v977, 0.0
    %v1035 = vsel %vm801, %v978, 0.0
    %v1036 = vsel %vm802, %v979, 0.0
    %v1037 = vsel %vm803, %v980, 0.0
    %v1038 = vsel %vm804, %v981, 0.0
    %v1039 = vsel %vm805, %v982, 0.0
    %v1040 = vsel %vm806, %v983, 0.0
    %v1041 = vsel %vm807, %v984, 0.0
    %v1042 = vsel %vm808, %v985, 0.0
    %v1043 = vsel %vm809, %v986, 0.0
    %v1044 = vsel %vm810, %v987, 0.0
    %v1045 = vsel %vm811, %v988, 0.0
    %v1046 = vsel %vm812, %v989, 0.0
    %v1047 = vsel %vm813, %v990, 0.0
    %v1048 = vsel %vm814, %v991, 0.0
    %v1049 = vsel %vm815, %v992, 0.0
    %v1050 = vsel %vm816, %v993, 0.0
    %v1051 = vsel %vm817, %v994, 0.0
    %v1052 = vsel %vm818, %v995, 0.0
    %v1053 = vsel %vm819, %v996, 0.0
    %v1054 = vsel %vm820, %v997, 0.0
    %v1055 = vsel %vm821, %v998, 0.0
    %v1056 = vsel %vm822, %v999, 0.0
    %v1057 = vsel %vm823, %v1000, 0.0
    %v1058 = vsel %vm824, %v1001, 0.0
    %v1059 = vsel %vm825, %v1002, 0.0
    %v1060 = vsel %vm826, %v1003, 0.0
    %v1061 = vsel %vm827, %v1004, 0.0
    %v1062 = vsel %vm828, %v1005, 0.0
    %v1063 = vsel %vm829, %v1006, 0.0
    %v1064 = vsel %vm830, %v1007, 0.0
    %v1065 = vsel %vm831, %v1008, 0.0
    %v1066 = vsel %vm832, %v1009, 0.0
    %v1067 = vsel %vm833, %v1010, 0.0
    %v1068 = vsel %vm834, %v1011, 0.0
    %v1069 = vsel %vm835, %v1012, 0.0
    %v1070 = vsel %vm836, %v1013, 0.0
    %v1071 = vsel %vm837, %v1014, 0.0
    %v1072 = vsel %vm838, %v1015, 0.0
    %v1073 = vsel %vm839, %v1016, 0.0
    %v1074 = vsel %vm840, %v1017, 0.0
    %v1075 = vsel %vm841, %v1018, 0.0
    %v1076 = vsel %vm842, %v1019, 0.0
    %v1077 = vmul.f32 %v1020, %v1020
    %v1078 = vmul.f32 %v1021, %v1021
    %v1079 = vmul.f32 %v1022, %v1022
    %v1080 = vmul.f32 %v1023, %v1023
    %v1081 = vmul.f32 %v1024, %v1024
    %v1082 = vmul.f32 %v1025, %v1025
    %v1083 = vmul.f32 %v1026, %v1026
    %v1084 = vmul.f32 %v1027, %v1027
    %v1085 = vmul.f32 %v1028, %v1028
    %v1086 = vmul.f32 %v1029, %v1029
    %v1087 = vmul.f32 %v1030, %v1030
    %v1088 = vmul.f32 %v1031, %v1031
    %v1089 = vmul.f32 %v1032, %v1032
    %v1090 = vmul.f32 %v1033, %v1033
    %v1091 = vmul.f32 %v1034, %v1034
    %v1092 = vmul.f32 %v1035, %v1035
    %v1093 = vmul.f32 %v1036, %v1036
    %v1094 = vmul.f32 %v1037, %v1037
    %v1095 = vmul.f32 %v1038, %v1038
    %v1096 = vmul.f32 %v1039, %v1039
    %v1097 = vmul.f32 %v1040, %v1040
    %v1098 = vmul.f32 %v1041, %v1041
    %v1099 = vmul.f32 %v1042, %v1042
    %v1100 = vmul.f32 %v1043, %v1043
    %v1101 = vmul.f32 %v1044, %v1044
    %v1102 = vmul.f32 %v1045, %v1045
    %v1103 = vmul.f32 %v1046, %v1046
    %v1104 = vmul.f32 %v1047, %v1047
    %v1105 = vmul.f32 %v1048, %v1048
    %v1106 = vmul.f32 %v1049, %v1049
    %v1107 = vmul.f32 %v1050, %v1050
    %v1108 = vmul.f32 %v1051, %v1051
    %v1109 = vmul.f32 %v1052, %v1052
    %v1110 = vmul.f32 %v1053, %v1053
    %v1111 = vmul.f32 %v1054, %v1054
    %v1112 = vmul.f32 %v1055, %v1055
    %v1113 = vmul.f32 %v1056, %v1056
    %v1114 = vmul.f32 %v1057, %v1057
    %v1115 = vmul.f32 %v1058, %v1058
    %v1116 = vmul.f32 %v1059, %v1059
    %v1117 = vmul.f32 %v1060, %v1060
    %v1118 = vmul.f32 %v1061, %v1061
    %v1119 = vmul.f32 %v1062, %v1062
    %v1120 = vmul.f32 %v1063, %v1063
    %v1121 = vmul.f32 %v1064, %v1064
    %v1122 = vmul.f32 %v1065, %v1065
    %v1123 = vmul.f32 %v1066, %v1066
    %v1124 = vmul.f32 %v1067, %v1067
    %v1125 = vmul.f32 %v1068, %v1068
    %v1126 = vmul.f32 %v1069, %v1069
    %v1127 = vmul.f32 %v1070, %v1070
    %v1128 = vmul.f32 %v1071, %v1071
    %v1129 = vmul.f32 %v1072, %v1072
    %v1130 = vmul.f32 %v1073, %v1073
    %v1131 = vmul.f32 %v1074, %v1074
    %v1132 = vmul.f32 %v1075, %v1075
    %v1133 = vmul.f32 %v1076, %v1076
    %v1134 = vadd.f32 %v1077, %v1078
    %v1135 = vadd.f32 %v1134, %v1079
    %v1136 = vadd.f32 %v1135, %v1080
    %v1137 = vadd.f32 %v1136, %v1081
    %v1138 = vadd.f32 %v1137, %v1082
    %v1139 = vadd.f32 %v1138, %v1083
    %v1140 = vadd.f32 %v1139, %v1084
    %v1141 = vadd.f32 %v1140, %v1085
    %v1142 = vadd.f32 %v1141, %v1086
    %v1143 = vadd.f32 %v1142, %v1087
    %v1144 = vadd.f32 %v1143, %v1088
    %v1145 = vadd.f32 %v1144, %v1089
    %v1146 = vadd.f32 %v1145, %v1090
    %v1147 = vadd.f32 %v1146, %v1091
    %v1148 = vadd.f32 %v1147, %v1092
    %v1149 = vadd.f32 %v1148, %v1093
    %v1150 = vadd.f32 %v1149, %v1094
    %v1151 = vadd.f32 %v1150, %v1095
    %v1152 = vadd.f32 %v1151, %v1096
    %v1153 = vadd.f32 %v1152, %v1097
    %v1154 = vadd.f32 %v1153, %v1098
    %v1155 = vadd.f32 %v1154, %v1099
    %v1156 = vadd.f32 %v1155, %v1100
    %v1157 = vadd.f32 %v1156, %v1101
    %v1158 = vadd.f32 %v1157, %v1102
    %v1159 = vadd.f32 %v1158, %v1103
    %v1160 = vadd.f32 %v1159, %v1104
    %v1161 = vadd.f32 %v1160, %v1105
    %v1162 = vadd.f32 %v1161, %v1106
    %v1163 = vadd.f32 %v1162, %v1107
    %v1164 = vadd.f32 %v1163, %v1108
    %v1165 = vadd.f32 %v1164, %v1109
    %v1166 = vadd.f32 %v1165, %v1110
    %v1167 = vadd.f32 %v1166, %v1111
    %v1168 = vadd.f32 %v1167, %v1112
    %v1169 = vadd.f32 %v1168, %v1113
    %v1170 = vadd.f32 %v1169, %v1114
    %v1171 = vadd.f32 %v1170, %v1115
    %v1172 = vadd.f32 %v1171, %v1116
    %v1173 = vadd.f32 %v1172, %v1117
    %v1174 = vadd.f32 %v1173, %v1118
    %v1175 = vadd.f32 %v1174, %v1119
    %v1176 = vadd.f32 %v1175, %v1120
    %v1177 = vadd.f32 %v1176, %v1121
    %v1178 = vadd.f32 %v1177, %v1122
    %v1179 = vadd.f32 %v1178, %v1123
    %v1180 = vadd.f32 %v1179, %v1124
    %v1181 = vadd.f32 %v1180, %v1125
    %v1182 = vadd.f32 %v1181, %v1126
    %v1183 = vadd.f32 %v1182, %v1127
    %v1184 = vadd.f32 %v1183, %v1128
    %v1185 = vadd.f32 %v1184, %v1129
    %v1186 = vadd.f32 %v1185, %v1130
    %v1187 = vadd.f32 %v1186, %v1131
    %v1188 = vadd.f32 %v1187, %v1132
    %v1189 = vadd.f32 %v1188, %v1133
    %v1190 = vrot.slane %v1189, 4
    %v1191 = vadd.f32 %v1189, %v1190
    %v1192 = vrot.slane %v1191, 2
    %v1193 = vadd.f32 %v1191, %v1192
    %v1194 = vrot.slane %v1193, 1
    %v1195 = vadd.f32 %v1193, %v1194
    %v1196 = vmul.f32 %v1195, 0.0022222223
    %v1197 = vld [vmem:[%s3] sm:$0x1]
    %v1198 = vadd.f32 %v1196, 1e-05
    %v1199 = vrsqrt.pop %v1198
    %v1200 = vmul.f32 %v1197, %v1199
    %v1201 = vld [vmem:[%s4] sm:$0x1]
    %v1202 = vmul.f32 %v962, %v1200
    %v1203 = vsub.f32 %v1201, %v1202
    %v1205 = vlaneseq
    %v1206 = vshrl.u32 %v1205, 7
    %v1207 = vsub.s32 0, %v1206
    %v1208 = vrot.slane %v1200, %v1207
    %v1210 = vmul.f32 %v385, %v1208
    %v1211 = vmul.f32 %v388, %v1208
    %v1212 = vmul.f32 %v393, %v1208
    %v1213 = vmul.f32 %v396, %v1208
    %v1214 = vmul.f32 %v401, %v1208
    %v1215 = vmul.f32 %v404, %v1208
    %v1216 = vmul.f32 %v409, %v1208
    %v1217 = vmul.f32 %v412, %v1208
    %v1218 = vmul.f32 %v417, %v1208
    %v1219 = vmul.f32 %v420, %v1208
    %v1220 = vmul.f32 %v425, %v1208
    %v1221 = vmul.f32 %v428, %v1208
    %v1222 = vmul.f32 %v433, %v1208
    %v1223 = vmul.f32 %v436, %v1208
    %v1224 = vmul.f32 %v441, %v1208
    %v1225 = vmul.f32 %v444, %v1208
    %v1226 = vmul.f32 %v449, %v1208
    %v1227 = vmul.f32 %v452, %v1208
    %v1228 = vmul.f32 %v457, %v1208
    %v1229 = vmul.f32 %v460, %v1208
    %v1230 = vmul.f32 %v465, %v1208
    %v1231 = vmul.f32 %v468, %v1208
    %v1232 = vmul.f32 %v473, %v1208
    %v1233 = vmul.f32 %v476, %v1208
    %v1234 = vmul.f32 %v481, %v1208
    %v1235 = vmul.f32 %v484, %v1208
    %v1236 = vmul.f32 %v489, %v1208
    %v1237 = vmul.f32 %v492, %v1208
    %v1238 = vmul.f32 %v497, %v1208
    %v1239 = vmul.f32 %v500, %v1208
    %v1240 = vmul.f32 %v505, %v1208
    %v1241 = vmul.f32 %v508, %v1208
    %v1242 = vmul.f32 %v513, %v1208
    %v1243 = vmul.f32 %v516, %v1208
    %v1244 = vmul.f32 %v521, %v1208
    %v1245 = vmul.f32 %v524, %v1208
    %v1246 = vmul.f32 %v529, %v1208
    %v1247 = vmul.f32 %v532, %v1208
    %v1248 = vmul.f32 %v537, %v1208
    %v1249 = vmul.f32 %v540, %v1208
    %v1250 = vmul.f32 %v545, %v1208
    %v1251 = vmul.f32 %v548, %v1208
    %v1252 = vmul.f32 %v553, %v1208
    %v1253 = vmul.f32 %v556, %v1208
    %v1254 = vmul.f32 %v561, %v1208
    %v1255 = vmul.f32 %v564, %v1208
    %v1256 = vmul.f32 %v569, %v1208
    %v1257 = vmul.f32 %v572, %v1208
    %v1258 = vmul.f32 %v577, %v1208
    %v1259 = vmul.f32 %v580, %v1208
    %v1260 = vmul.f32 %v585, %v1208
    %v1261 = vmul.f32 %v588, %v1208
    %v1262 = vmul.f32 %v593, %v1208
    %v1263 = vmul.f32 %v596, %v1208
    %v1264 = vmul.f32 %v601, %v1208
    %v1265 = vmul.f32 %v604, %v1208
    %v1266 = vmul.f32 %v609, %v1208
    %v1268 = vlaneseq
    %v1269 = vshrl.u32 %v1268, 7
    %v1270 = vsub.s32 0, %v1269
    %v1271 = vrot.slane %v1203, %v1270
    %v1273 = vadd.f32 %v1210, %v1271
    %v1274 = vadd.f32 %v1211, %v1271
    %v1275 = vadd.f32 %v1212, %v1271
    %v1276 = vadd.f32 %v1213, %v1271
    %v1277 = vadd.f32 %v1214, %v1271
    %v1278 = vadd.f32 %v1215, %v1271
    %v1279 = vadd.f32 %v1216, %v1271
    %v1280 = vadd.f32 %v1217, %v1271
    %v1281 = vadd.f32 %v1218, %v1271
    %v1282 = vadd.f32 %v1219, %v1271
    %v1283 = vadd.f32 %v1220, %v1271
    %v1284 = vadd.f32 %v1221, %v1271
    %v1285 = vadd.f32 %v1222, %v1271
    %v1286 = vadd.f32 %v1223, %v1271
    %v1287 = vadd.f32 %v1224, %v1271
    %v1288 = vadd.f32 %v1225, %v1271
    %v1289 = vadd.f32 %v1226, %v1271
    %v1290 = vadd.f32 %v1227, %v1271
    %v1291 = vadd.f32 %v1228, %v1271
    %v1292 = vadd.f32 %v1229, %v1271
    %v1293 = vadd.f32 %v1230, %v1271
    %v1294 = vadd.f32 %v1231, %v1271
    %v1295 = vadd.f32 %v1232, %v1271
    %v1296 = vadd.f32 %v1233, %v1271
    %v1297 = vadd.f32 %v1234, %v1271
    %v1298 = vadd.f32 %v1235, %v1271
    %v1299 = vadd.f32 %v1236, %v1271
    %v1300 = vadd.f32 %v1237, %v1271
    %v1301 = vadd.f32 %v1238, %v1271
    %v1302 = vadd.f32 %v1239, %v1271
    %v1303 = vadd.f32 %v1240, %v1271
    %v1304 = vadd.f32 %v1241, %v1271
    %v1305 = vadd.f32 %v1242, %v1271
    %v1306 = vadd.f32 %v1243, %v1271
    %v1307 = vadd.f32 %v1244, %v1271
    %v1308 = vadd.f32 %v1245, %v1271
    %v1309 = vadd.f32 %v1246, %v1271
    %v1310 = vadd.f32 %v1247, %v1271
    %v1311 = vadd.f32 %v1248, %v1271
    %v1312 = vadd.f32 %v1249, %v1271
    %v1313 = vadd.f32 %v1250, %v1271
    %v1314 = vadd.f32 %v1251, %v1271
    %v1315 = vadd.f32 %v1252, %v1271
    %v1316 = vadd.f32 %v1253, %v1271
    %v1317 = vadd.f32 %v1254, %v1271
    %v1318 = vadd.f32 %v1255, %v1271
    %v1319 = vadd.f32 %v1256, %v1271
    %v1320 = vadd.f32 %v1257, %v1271
    %v1321 = vadd.f32 %v1258, %v1271
    %v1322 = vadd.f32 %v1259, %v1271
    %v1323 = vadd.f32 %v1260, %v1271
    %v1324 = vadd.f32 %v1261, %v1271
    %v1325 = vadd.f32 %v1262, %v1271
    %v1326 = vadd.f32 %v1263, %v1271
    %v1327 = vadd.f32 %v1264, %v1271
    %v1328 = vadd.f32 %v1265, %v1271
    %v1329 = vadd.f32 %v1266, %v1271
    %v1330 = vmul.f32 %v1273, 0.5
    %v1331 = vmul.f32 %v1274, 0.5
    %v1332 = vmul.f32 %v1275, 0.5
    %v1333 = vmul.f32 %v1276, 0.5
    %v1334 = vmul.f32 %v1277, 0.5
    %v1335 = vmul.f32 %v1278, 0.5
    %v1336 = vmul.f32 %v1279, 0.5
    %v1337 = vmul.f32 %v1280, 0.5
    %v1338 = vmul.f32 %v1281, 0.5
    %v1339 = vmul.f32 %v1282, 0.5
    %v1340 = vmul.f32 %v1283, 0.5
    %v1341 = vmul.f32 %v1284, 0.5
    %v1342 = vmul.f32 %v1285, 0.5
    %v1343 = vmul.f32 %v1286, 0.5
    %v1344 = vmul.f32 %v1287, 0.5
    %v1345 = vmul.f32 %v1288, 0.5
    %v1346 = vmul.f32 %v1289, 0.5
    %v1347 = vmul.f32 %v1290, 0.5
    %v1348 = vmul.f32 %v1291, 0.5
    %v1349 = vmul.f32 %v1292, 0.5
    %v1350 = vmul.f32 %v1293, 0.5
    %v1351 = vmul.f32 %v1294, 0.5
    %v1352 = vmul.f32 %v1295, 0.5
    %v1353 = vmul.f32 %v1296, 0.5
    %v1354 = vmul.f32 %v1297, 0.5
    %v1355 = vmul.f32 %v1298, 0.5
    %v1356 = vmul.f32 %v1299, 0.5
    %v1357 = vmul.f32 %v1300, 0.5
    %v1358 = vmul.f32 %v1301, 0.5
    %v1359 = vmul.f32 %v1302, 0.5
    %v1360 = vmul.f32 %v1303, 0.5
    %v1361 = vmul.f32 %v1304, 0.5
    %v1362 = vmul.f32 %v1305, 0.5
    %v1363 = vmul.f32 %v1306, 0.5
    %v1364 = vmul.f32 %v1307, 0.5
    %v1365 = vmul.f32 %v1308, 0.5
    %v1366 = vmul.f32 %v1309, 0.5
    %v1367 = vmul.f32 %v1310, 0.5
    %v1368 = vmul.f32 %v1311, 0.5
    %v1369 = vmul.f32 %v1312, 0.5
    %v1370 = vmul.f32 %v1313, 0.5
    %v1371 = vmul.f32 %v1314, 0.5
    %v1372 = vmul.f32 %v1315, 0.5
    %v1373 = vmul.f32 %v1316, 0.5
    %v1374 = vmul.f32 %v1317, 0.5
    %v1375 = vmul.f32 %v1318, 0.5
    %v1376 = vmul.f32 %v1319, 0.5
    %v1377 = vmul.f32 %v1320, 0.5
    %v1378 = vmul.f32 %v1321, 0.5
    %v1379 = vmul.f32 %v1322, 0.5
    %v1380 = vmul.f32 %v1323, 0.5
    %v1381 = vmul.f32 %v1324, 0.5
    %v1382 = vmul.f32 %v1325, 0.5
    %v1383 = vmul.f32 %v1326, 0.5
    %v1384 = vmul.f32 %v1327, 0.5
    %v1385 = vmul.f32 %v1328, 0.5
    %v1386 = vmul.f32 %v1329, 0.5
    %v1387 = vtanh.pop %v1330
    %v1388 = vtanh.pop %v1331
    %v1389 = vtanh.pop %v1332
    %v1390 = vtanh.pop %v1333
    %v1391 = vtanh.pop %v1334
    %v1392 = vtanh.pop %v1335
    %v1393 = vtanh.pop %v1336
    %v1394 = vtanh.pop %v1337
    %v1395 = vtanh.pop %v1338
    %v1396 = vtanh.pop %v1339
    %v1397 = vtanh.pop %v1340
    %v1398 = vtanh.pop %v1341
    %v1399 = vtanh.pop %v1342
    %v1400 = vtanh.pop %v1343
    %v1401 = vtanh.pop %v1344
    %v1402 = vtanh.pop %v1345
    %v1403 = vtanh.pop %v1346
    %v1404 = vtanh.pop %v1347
    %v1405 = vtanh.pop %v1348
    %v1406 = vtanh.pop %v1349
    %v1407 = vtanh.pop %v1350
    %v1408 = vtanh.pop %v1351
    %v1409 = vtanh.pop %v1352
    %v1410 = vtanh.pop %v1353
    %v1411 = vtanh.pop %v1354
    %v1412 = vtanh.pop %v1355
    %v1413 = vtanh.pop %v1356
    %v1414 = vtanh.pop %v1357
    %v1415 = vtanh.pop %v1358
    %v1416 = vtanh.pop %v1359
    %v1417 = vtanh.pop %v1360
    %v1418 = vtanh.pop %v1361
    %v1419 = vtanh.pop %v1362
    %v1420 = vtanh.pop %v1363
    %v1421 = vtanh.pop %v1364
    %v1422 = vtanh.pop %v1365
    %v1423 = vtanh.pop %v1366
    %v1424 = vtanh.pop %v1367
    %v1425 = vtanh.pop %v1368
    %v1426 = vtanh.pop %v1369
    %v1427 = vtanh.pop %v1370
    %v1428 = vtanh.pop %v1371
    %v1429 = vtanh.pop %v1372
    %v1430 = vtanh.pop %v1373
    %v1431 = vtanh.pop %v1374
    %v1432 = vtanh.pop %v1375
    %v1433 = vtanh.pop %v1376
    %v1434 = vtanh.pop %v1377
    %v1435 = vtanh.pop %v1378
    %v1436 = vtanh.pop %v1379
    %v1437 = vtanh.pop %v1380
    %v1438 = vtanh.pop %v1381
    %v1439 = vtanh.pop %v1382
    %v1440 = vtanh.pop %v1383
    %v1441 = vtanh.pop %v1384
    %v1442 = vtanh.pop %v1385
    %v1443 = vtanh.pop %v1386
    %v1444 = vadd.f32 %v1387, 1.0
    %v1445 = vadd.f32 %v1388, 1.0
    %v1446 = vadd.f32 %v1389, 1.0
    %v1447 = vadd.f32 %v1390, 1.0
    %v1448 = vadd.f32 %v1391, 1.0
    %v1449 = vadd.f32 %v1392, 1.0
    %v1450 = vadd.f32 %v1393, 1.0
    %v1451 = vadd.f32 %v1394, 1.0
    %v1452 = vadd.f32 %v1395, 1.0
    %v1453 = vadd.f32 %v1396, 1.0
    %v1454 = vadd.f32 %v1397, 1.0
    %v1455 = vadd.f32 %v1398, 1.0
    %v1456 = vadd.f32 %v1399, 1.0
    %v1457 = vadd.f32 %v1400, 1.0
    %v1458 = vadd.f32 %v1401, 1.0
    %v1459 = vadd.f32 %v1402, 1.0
    %v1460 = vadd.f32 %v1403, 1.0
    %v1461 = vadd.f32 %v1404, 1.0
    %v1462 = vadd.f32 %v1405, 1.0
    %v1463 = vadd.f32 %v1406, 1.0
    %v1464 = vadd.f32 %v1407, 1.0
    %v1465 = vadd.f32 %v1408, 1.0
    %v1466 = vadd.f32 %v1409, 1.0
    %v1467 = vadd.f32 %v1410, 1.0
    %v1468 = vadd.f32 %v1411, 1.0
    %v1469 = vadd.f32 %v1412, 1.0
    %v1470 = vadd.f32 %v1413, 1.0
    %v1471 = vadd.f32 %v1414, 1.0
    %v1472 = vadd.f32 %v1415, 1.0
    %v1473 = vadd.f32 %v1416, 1.0
    %v1474 = vadd.f32 %v1417, 1.0
    %v1475 = vadd.f32 %v1418, 1.0
    %v1476 = vadd.f32 %v1419, 1.0
    %v1477 = vadd.f32 %v1420, 1.0
    %v1478 = vadd.f32 %v1421, 1.0
    %v1479 = vadd.f32 %v1422, 1.0
    %v1480 = vadd.f32 %v1423, 1.0
    %v1481 = vadd.f32 %v1424, 1.0
    %v1482 = vadd.f32 %v1425, 1.0
    %v1483 = vadd.f32 %v1426, 1.0
    %v1484 = vadd.f32 %v1427, 1.0
    %v1485 = vadd.f32 %v1428, 1.0
    %v1486 = vadd.f32 %v1429, 1.0
    %v1487 = vadd.f32 %v1430, 1.0
    %v1488 = vadd.f32 %v1431, 1.0
    %v1489 = vadd.f32 %v1432, 1.0
    %v1490 = vadd.f32 %v1433, 1.0
    %v1491 = vadd.f32 %v1434, 1.0
    %v1492 = vadd.f32 %v1435, 1.0
    %v1493 = vadd.f32 %v1436, 1.0
    %v1494 = vadd.f32 %v1437, 1.0
    %v1495 = vadd.f32 %v1438, 1.0
    %v1496 = vadd.f32 %v1439, 1.0
    %v1497 = vadd.f32 %v1440, 1.0
    %v1498 = vadd.f32 %v1441, 1.0
    %v1499 = vadd.f32 %v1442, 1.0
    %v1500 = vadd.f32 %v1443, 1.0
    %v1501 = vmul.f32 %v1444, 0.5
    %v1502 = vmul.f32 %v1445, 0.5
    %v1503 = vmul.f32 %v1446, 0.5
    %v1504 = vmul.f32 %v1447, 0.5
    %v1505 = vmul.f32 %v1448, 0.5
    %v1506 = vmul.f32 %v1449, 0.5
    %v1507 = vmul.f32 %v1450, 0.5
    %v1508 = vmul.f32 %v1451, 0.5
    %v1509 = vmul.f32 %v1452, 0.5
    %v1510 = vmul.f32 %v1453, 0.5
    %v1511 = vmul.f32 %v1454, 0.5
    %v1512 = vmul.f32 %v1455, 0.5
    %v1513 = vmul.f32 %v1456, 0.5
    %v1514 = vmul.f32 %v1457, 0.5
    %v1515 = vmul.f32 %v1458, 0.5
    %v1516 = vmul.f32 %v1459, 0.5
    %v1517 = vmul.f32 %v1460, 0.5
    %v1518 = vmul.f32 %v1461, 0.5
    %v1519 = vmul.f32 %v1462, 0.5
    %v1520 = vmul.f32 %v1463, 0.5
    %v1521 = vmul.f32 %v1464, 0.5
    %v1522 = vmul.f32 %v1465, 0.5
    %v1523 = vmul.f32 %v1466, 0.5
    %v1524 = vmul.f32 %v1467, 0.5
    %v1525 = vmul.f32 %v1468, 0.5
    %v1526 = vmul.f32 %v1469, 0.5
    %v1527 = vmul.f32 %v1470, 0.5
    %v1528 = vmul.f32 %v1471, 0.5
    %v1529 = vmul.f32 %v1472, 0.5
    %v1530 = vmul.f32 %v1473, 0.5
    %v1531 = vmul.f32 %v1474, 0.5
    %v1532 = vmul.f32 %v1475, 0.5
    %v1533 = vmul.f32 %v1476, 0.5
    %v1534 = vmul.f32 %v1477, 0.5
    %v1535 = vmul.f32 %v1478, 0.5
    %v1536 = vmul.f32 %v1479, 0.5
    %v1537 = vmul.f32 %v1480, 0.5
    %v1538 = vmul.f32 %v1481, 0.5
    %v1539 = vmul.f32 %v1482, 0.5
    %v1540 = vmul.f32 %v1483, 0.5
    %v1541 = vmul.f32 %v1484, 0.5
    %v1542 = vmul.f32 %v1485, 0.5
    %v1543 = vmul.f32 %v1486, 0.5
    %v1544 = vmul.f32 %v1487, 0.5
    %v1545 = vmul.f32 %v1488, 0.5
    %v1546 = vmul.f32 %v1489, 0.5
    %v1547 = vmul.f32 %v1490, 0.5
    %v1548 = vmul.f32 %v1491, 0.5
    %v1549 = vmul.f32 %v1492, 0.5
    %v1550 = vmul.f32 %v1493, 0.5
    %v1551 = vmul.f32 %v1494, 0.5
    %v1552 = vmul.f32 %v1495, 0.5
    %v1553 = vmul.f32 %v1496, 0.5
    %v1554 = vmul.f32 %v1497, 0.5
    %v1555 = vmul.f32 %v1498, 0.5
    %v1556 = vmul.f32 %v1499, 0.5
    %v1557 = vmul.f32 %v1500, 0.5
    %v1558 = vmul.f32 %v1273, %v1501
    %v1559 = vmul.f32 %v1274, %v1502
    %v1560 = vmul.f32 %v1275, %v1503
    %v1561 = vmul.f32 %v1276, %v1504
    %v1562 = vmul.f32 %v1277, %v1505
    %v1563 = vmul.f32 %v1278, %v1506
    %v1564 = vmul.f32 %v1279, %v1507
    %v1565 = vmul.f32 %v1280, %v1508
    %v1566 = vmul.f32 %v1281, %v1509
    %v1567 = vmul.f32 %v1282, %v1510
    %v1568 = vmul.f32 %v1283, %v1511
    %v1569 = vmul.f32 %v1284, %v1512
    %v1570 = vmul.f32 %v1285, %v1513
    %v1571 = vmul.f32 %v1286, %v1514
    %v1572 = vmul.f32 %v1287, %v1515
    %v1573 = vmul.f32 %v1288, %v1516
    %v1574 = vmul.f32 %v1289, %v1517
    %v1575 = vmul.f32 %v1290, %v1518
    %v1576 = vmul.f32 %v1291, %v1519
    %v1577 = vmul.f32 %v1292, %v1520
    %v1578 = vmul.f32 %v1293, %v1521
    %v1579 = vmul.f32 %v1294, %v1522
    %v1580 = vmul.f32 %v1295, %v1523
    %v1581 = vmul.f32 %v1296, %v1524
    %v1582 = vmul.f32 %v1297, %v1525
    %v1583 = vmul.f32 %v1298, %v1526
    %v1584 = vmul.f32 %v1299, %v1527
    %v1585 = vmul.f32 %v1300, %v1528
    %v1586 = vmul.f32 %v1301, %v1529
    %v1587 = vmul.f32 %v1302, %v1530
    %v1588 = vmul.f32 %v1303, %v1531
    %v1589 = vmul.f32 %v1304, %v1532
    %v1590 = vmul.f32 %v1305, %v1533
    %v1591 = vmul.f32 %v1306, %v1534
    %v1592 = vmul.f32 %v1307, %v1535
    %v1593 = vmul.f32 %v1308, %v1536
    %v1594 = vmul.f32 %v1309, %v1537
    %v1595 = vmul.f32 %v1310, %v1538
    %v1596 = vmul.f32 %v1311, %v1539
    %v1597 = vmul.f32 %v1312, %v1540
    %v1598 = vmul.f32 %v1313, %v1541
    %v1599 = vmul.f32 %v1314, %v1542
    %v1600 = vmul.f32 %v1315, %v1543
    %v1601 = vmul.f32 %v1316, %v1544
    %v1602 = vmul.f32 %v1317, %v1545
    %v1603 = vmul.f32 %v1318, %v1546
    %v1604 = vmul.f32 %v1319, %v1547
    %v1605 = vmul.f32 %v1320, %v1548
    %v1606 = vmul.f32 %v1321, %v1549
    %v1607 = vmul.f32 %v1322, %v1550
    %v1608 = vmul.f32 %v1323, %v1551
    %v1609 = vmul.f32 %v1324, %v1552
    %v1610 = vmul.f32 %v1325, %v1553
    %v1611 = vmul.f32 %v1326, %v1554
    %v1612 = vmul.f32 %v1327, %v1555
    %v1613 = vmul.f32 %v1328, %v1556
    %v1614 = vmul.f32 %v1329, %v1557
    %1615 = vst [vmem:[#allocation7] sm:$0xff] %v1558
    %1616 = vst [vmem:[#allocation7 + $0x8] sm:$0xff] %v1559
    %1617 = vst [vmem:[#allocation7 + $0x10] sm:$0xff] %v1560
    %1618 = vst [vmem:[#allocation7 + $0x18] sm:$0xff] %v1561
    %1619 = vst [vmem:[#allocation7 + $0x20] sm:$0xff] %v1562
    %1620 = vst [vmem:[#allocation7 + $0x28] sm:$0xff] %v1563
    %1621 = vst [vmem:[#allocation7 + $0x30] sm:$0xff] %v1564
    %1622 = vst [vmem:[#allocation7 + $0x38] sm:$0xff] %v1565
    %1623 = vst [vmem:[#allocation7 + $0x40] sm:$0xff] %v1566
    %1624 = vst [vmem:[#allocation7 + $0x48] sm:$0xff] %v1567
    %1625 = vst [vmem:[#allocation7 + $0x50] sm:$0xff] %v1568
    %1626 = vst [vmem:[#allocation7 + $0x58] sm:$0xff] %v1569
    %1627 = vst [vmem:[#allocation7 + $0x60] sm:$0xff] %v1570
    %1628 = vst [vmem:[#allocation7 + $0x68] sm:$0xff] %v1571
    %1629 = vst [vmem:[#allocation7 + $0x70] sm:$0xff] %v1572
    %1630 = vst [vmem:[#allocation7 + $0x78] sm:$0xff] %v1573
    %1631 = vst [vmem:[#allocation7 + $0x80] sm:$0xff] %v1574
    %1632 = vst [vmem:[#allocation7 + $0x88] sm:$0xff] %v1575
    %1633 = vst [vmem:[#allocation7 + $0x90] sm:$0xff] %v1576
    %1634 = vst [vmem:[#allocation7 + $0x98] sm:$0xff] %v1577
    %1635 = vst [vmem:[#allocation7 + $0xa0] sm:$0xff] %v1578
    %1636 = vst [vmem:[#allocation7 + $0xa8] sm:$0xff] %v1579
    %1637 = vst [vmem:[#allocation7 + $0xb0] sm:$0xff] %v1580
    %1638 = vst [vmem:[#allocation7 + $0xb8] sm:$0xff] %v1581
    %1639 = vst [vmem:[#allocation7 + $0xc0] sm:$0xff] %v1582
    %1640 = vst [vmem:[#allocation7 + $0xc8] sm:$0xff] %v1583
    %1641 = vst [vmem:[#allocation7 + $0xd0] sm:$0xff] %v1584
    %1642 = vst [vmem:[#allocation7 + $0xd8] sm:$0xff] %v1585
    %1643 = vst [vmem:[#allocation7 + $0xe0] sm:$0xff] %v1586
    %1644 = vst [vmem:[#allocation7 + $0xe8] sm:$0xff] %v1587
    %1645 = vst [vmem:[#allocation7 + $0xf0] sm:$0xff] %v1588
    %1646 = vst [vmem:[#allocation7 + $0xf8] sm:$0xff] %v1589
    %1647 = vst [vmem:[#allocation7 + $0x100] sm:$0xff] %v1590
    %1648 = vst [vmem:[#allocation7 + $0x108] sm:$0xff] %v1591
    %1649 = vst [vmem:[#allocation7 + $0x110] sm:$0xff] %v1592
    %1650 = vst [vmem:[#allocation7 + $0x118] sm:$0xff] %v1593
    %1651 = vst [vmem:[#allocation7 + $0x120] sm:$0xff] %v1594
    %1652 = vst [vmem:[#allocation7 + $0x128] sm:$0xff] %v1595
    %1653 = vst [vmem:[#allocation7 + $0x130] sm:$0xff] %v1596
    %1654 = vst [vmem:[#allocation7 + $0x138] sm:$0xff] %v1597
    %1655 = vst [vmem:[#allocation7 + $0x140] sm:$0xff] %v1598
    %1656 = vst [vmem:[#allocation7 + $0x148] sm:$0xff] %v1599
    %1657 = vst [vmem:[#allocation7 + $0x150] sm:$0xff] %v1600
    %1658 = vst [vmem:[#allocation7 + $0x158] sm:$0xff] %v1601
    %1659 = vst [vmem:[#allocation7 + $0x160] sm:$0xff] %v1602
    %1660 = vst [vmem:[#allocation7 + $0x168] sm:$0xff] %v1603
    %1661 = vst [vmem:[#allocation7 + $0x170] sm:$0xff] %v1604
    %1662 = vst [vmem:[#allocation7 + $0x178] sm:$0xff] %v1605
    %1663 = vst [vmem:[#allocation7 + $0x180] sm:$0xff] %v1606
    %1664 = vst [vmem:[#allocation7 + $0x188] sm:$0xff] %v1607
    %1665 = vst [vmem:[#allocation7 + $0x190] sm:$0xff] %v1608
    %1666 = vst [vmem:[#allocation7 + $0x198] sm:$0xff] %v1609
    %1667 = vst [vmem:[#allocation7 + $0x1a0] sm:$0xff] %v1610
    %1668 = vst [vmem:[#allocation7 + $0x1a8] sm:$0xff] %v1611
    %1669 = vst [vmem:[#allocation7 + $0x1b0] sm:$0xff] %v1612
    %1670 = vst [vmem:[#allocation7 + $0x1b8] sm:$0xff] %v1613
    %1671 = vst [vmem:[#allocation7 + $0x1c0] sm:$0xff] %v1614
    // Predicated region
    $region30: #{tpu_custom_call.1} parent=1 // pred_check
      _
    $region31: #{tpu_custom_call.1} parent=1 // pred_check_branch
      %1673 = sbr.rel (0) target = $region33
    $region32: #{tpu_custom_call.1} parent=1 // pred_region
      %s1675 = ssub.s32 7296, 7296
      %1676 = vsyncadd [#allocation4], %s1675
      %s1677 = sshll.u32 [#allocation7], 4
      %s1678 = int_to_ptr.vmem [resolvable:$true] %s1677
      %1683 = dma.vmem_to_hbm [thread:$0]  %s1678, 7296, %s5, [#allocation4], 128, 128, 8
    $region33: #{tpu_custom_call.1} parent=1 // pred_fallthru
      _
    // Predicated region
    $region34: #{tpu_custom_call.1} parent=1 // pred_check
      _
    $region35: #{tpu_custom_call.1} parent=1 // pred_check_branch
      %1685 = sbr.rel (0) target = $region37
    $region36: #{tpu_custom_call.1} parent=1 // pred_region
      %1686 = dma.done [#allocation4], 7296
    $region37: #{tpu_custom_call.1} parent=1 // pred_fallthru
      _
    %1687 = vsyncpa [#allocation3], 1
    %1688 = vsyncpa [#allocation6], 1
    %1689 = vsyncpa [#allocation4], 1

</llo_original>
